<compile_context>
chip_gen: v6e
topology: v6e:2x2x1
jax: 0.10.0
libtpu: 0.0.40
codegen_flags: <defaults>
</compile_context>

<pallas_src>
import jax
import jax.numpy as jnp
import numpy as np
from jax.experimental import pallas as pl
from jax.experimental.pallas import tpu as pltpu

_BB = 8  # batch rows per grid step (one (8,128) sublane tile)


def _lstm_kernel(emb_ref, wih_ref, whh_ref, b_ref, enc_ref, gx_sc):
    """Single-layer LSTM over T steps for one batch block.

    emb_ref : (T, BB, H)   f32   time-major embedded tokens
    wih_ref : (H, 4H)      bf16  W_ih^T  (PyTorch gate order i, f, g, o)
    whh_ref : (H, 4H)      bf16  W_hh^T
    b_ref   : (1, 4H)      f32   b_ih + b_hh
    enc_ref : (T, BB, H)   f32   all hidden states (time-major)
    gx_sc   : (T, BB, 4H)  f32   precomputed input-projection scratch
    """
    T, BB, H = emb_ref.shape

    # Hoisted, time-invariant input projection + bias (one big MXU matmul,
    # bias broadcast exactly once).
    x = emb_ref[...].reshape(T * BB, H).astype(jnp.bfloat16)
    gx = jnp.dot(x, wih_ref[...], preferred_element_type=jnp.float32) + b_ref[...]
    gx_sc[...] = gx.reshape(T, BB, 4 * H)

    h = jnp.zeros((BB, H), jnp.float32)
    c = jnp.zeros((BB, H), jnp.float32)

    # T is small & static -> unrolled Python loop; only h @ W_hh^T remains on
    # the serial critical path.
    for t in range(T):
        if t == 0:
            gates = gx_sc[0]                         # h0 == 0
        else:
            gates = gx_sc[t] + jnp.dot(h.astype(jnp.bfloat16), whh_ref[...],
                                       preferred_element_type=jnp.float32)
        i_g = jax.nn.sigmoid(gates[:, 0 * H:1 * H])
        f_g = jax.nn.sigmoid(gates[:, 1 * H:2 * H])
        g_g = jnp.tanh(gates[:, 2 * H:3 * H])
        o_g = jax.nn.sigmoid(gates[:, 3 * H:4 * H])
        c = f_g * c + i_g * g_g
        h = o_g * jnp.tanh(c)
        enc_ref[t] = h                               # dense (8,128) tile store


@jax.jit
def _run_lstm(emb_tbh, wih_t, whh_t, bias):
    """emb_tbh: (T, Bp, H) f32 with Bp % 8 == 0 -> encodings (T, Bp, H) f32."""
    T, Bp, H = emb_tbh.shape
    grid_spec = pltpu.PrefetchScalarGridSpec(
        num_scalar_prefetch=0,
        grid=(Bp // _BB,),
        in_specs=[
            pl.BlockSpec((T, _BB, H), lambda i: (0, i, 0)),
            pl.BlockSpec((H, 4 * H), lambda i: (0, 0)),
            pl.BlockSpec((H, 4 * H), lambda i: (0, 0)),
            pl.BlockSpec((1, 4 * H), lambda i: (0, 0)),
        ],
        out_specs=pl.BlockSpec((T, _BB, H), lambda i: (0, i, 0)),
        scratch_shapes=[pltpu.VMEM((T, _BB, 4 * H), jnp.float32)],
    )
    return pl.pallas_call(
        _lstm_kernel,
        grid_spec=grid_spec,
        out_shape=jax.ShapeDtypeStruct((T, Bp, H), jnp.float32),
        compiler_params=pltpu.CompilerParams(
            dimension_semantics=("parallel",)),  # batch rows are independent
    )(emb_tbh, wih_t, whh_t, bias)


class PallasModel:
    """JAX/Pallas port of the PyTorch `Model` (eval-mode forward)."""

    def __init__(self, vocab_size, n_classes, hidden_dim=128,
                 dropout_rate=0.1, key=None):
        self.vocab_size = vocab_size
        self.n_classes = n_classes
        self.hidden_dim = hidden_dim
        self.dropout_rate = dropout_rate  # eval-mode dropout == identity

        H = hidden_dim
        key = jax.random.PRNGKey(0) if key is None else key
        ks = jax.random.split(key, 6)
        bound = 1.0 / np.sqrt(H)
        self.embedding_table = jax.random.normal(
            ks[0], (vocab_size, H), jnp.float32)
        # PyTorch LSTM params, gate order (i, f, g, o); stored pre-transposed
        # and cast to bf16 for the bf16 MXU path (f32 accumulation in-kernel).
        w_ih = jax.random.uniform(ks[1], (4 * H, H), jnp.float32, -bound, bound)
        w_hh = jax.random.uniform(ks[2], (4 * H, H), jnp.float32, -bound, bound)
        b_ih = jax.random.uniform(ks[3], (4 * H,), jnp.float32, -bound, bound)
        b_hh = jax.random.uniform(ks[4], (4 * H,), jnp.float32, -bound, bound)
        self.w_ih_t = jnp.asarray(w_ih.T, jnp.bfloat16)          # (H, 4H) bf16
        self.w_hh_t = jnp.asarray(w_hh.T, jnp.bfloat16)          # (H, 4H) bf16
        self.bias = (b_ih + b_hh).reshape(1, 4 * H)              # (1, 4H) f32
        w_out = jax.random.uniform(
            ks[5], (n_classes, H), jnp.float32, -bound, bound)
        self.w_out_t = jnp.asarray(w_out.T)                      # (H, C) f32
        self.b_out = jnp.zeros((1, n_classes), jnp.float32)

    def forward(self, id, token_ids, label=None):
        del id  # unused, as in the reference model
        token_ids = jnp.asarray(token_ids, jnp.int32)
        B, T = token_ids.shape
        H = self.hidden_dim

        # Embedding lookup directly in time-major (T, B, H) layout (glue op).
        emb_tbh = jnp.take(self.embedding_table, token_ids.T, axis=0)

        # Pad batch to a multiple of the 8-row batch block if needed.
        Bp = ((B + _BB - 1) // _BB) * _BB
        if Bp != B:
            emb_tbh = jnp.pad(emb_tbh, ((0, 0), (0, Bp - B), (0, 0)))

        # TODO(synk): dropout is identity here (PyTorch eval-mode semantics).
        enc_tbh = _run_lstm(emb_tbh, self.w_ih_t, self.w_hh_t, self.bias)
        encodings = jnp.transpose(enc_tbh, (1, 0, 2))[:B]        # (B, T, H)

        # Last non-padding timestep per row (negative index wraps like torch).
        mask = token_ids != 0
        last_idx = jnp.sum(mask, axis=-1) - 1                    # (B,)
        idx = jnp.where(last_idx < 0, last_idx + T, last_idx)
        idx_b = jnp.broadcast_to(idx[:, None, None], (B, 1, H))
        last_enc = jnp.take_along_axis(encodings, idx_b, axis=1)[:, 0, :]

        # Tiny C-wide projection fused in the wrapper (avoids lane-sparse
        # masked stores in-kernel).
        logits = last_enc @ self.w_out_t + self.b_out            # (B, C) f32

        predictions = jnp.argmax(logits, axis=-1)
        no_answer_probability = 1.0 / (1.0 + jnp.exp(logits[:, 1]
                                                     - logits[:, 0]))
        out = {
            "logits": logits,
            "predictions": predictions,
            "no_answer_probability": no_answer_probability,
            "encodings": encodings,
        }
        if label is not None:
            label = jnp.asarray(label, jnp.int32)
            logp = jax.nn.log_softmax(logits, axis=-1)
            out["loss"] = -jnp.mean(
                jnp.take_along_axis(logp, label[:, None], axis=-1))
        return out


def _reference_forward(model, token_ids):
    """Pure-JAX reference mirroring the kernel math (bf16 matmuls, f32 acc)."""
    H = model.hidden_dim
    B, T = token_ids.shape
    emb = jnp.take(model.embedding_table, token_ids, axis=0).astype(jnp.bfloat16)
    h = jnp.zeros((B, H), jnp.float32)
    c = jnp.zeros((B, H), jnp.float32)
    encs = []
    for t in range(T):
        gates = (jnp.dot(emb[:, t, :], model.w_ih_t,
                         preferred_element_type=jnp.float32)
                 + jnp.dot(h.astype(jnp.bfloat16), model.w_hh_t,
                           preferred_element_type=jnp.float32)
                 + model.bias)
        i = jax.nn.sigmoid(gates[:, 0 * H:1 * H])
        f = jax.nn.sigmoid(gates[:, 1 * H:2 * H])
        g = jnp.tanh(gates[:, 2 * H:3 * H])
        o = jax.nn.sigmoid(gates[:, 3 * H:4 * H])
        c = f * c + i * g
        h = o * jnp.tanh(c)
        encs.append(h)
    encodings = jnp.stack(encs, axis=1)
    mask = token_ids != 0
    last_idx = jnp.sum(mask, axis=-1) - 1
    idx = jnp.where(last_idx < 0, last_idx + T, last_idx)
    idx_b = jnp.broadcast_to(idx[:, None, None], (B, 1, H))
    last_enc = jnp.take_along_axis(encodings, idx_b, axis=1)[:, 0, :]
    logits = last_enc @ model.w_out_t + model.b_out
    return encodings, logits


if __name__ == "__main__":
    VOCAB, N_CLASSES, HIDDEN = 32, 4, 128
    B, T = 16, 8   # B=16 -> two batch blocks -> exercises the parallel grid axis

    key = jax.random.PRNGKey(0)
    model = PallasModel(VOCAB, N_CLASSES, hidden_dim=HIDDEN, key=key)

    # Deterministic token ids in [1, VOCAB) with trailing zero padding.
    tok_key, _ = jax.random.split(key)
    token_ids = jax.random.randint(tok_key, (B, T), 1, VOCAB, dtype=jnp.int32)
    lengths = (jnp.arange(B) % (T - 2)) + 2          # per-row valid lengths >= 2
    pad_mask = jnp.arange(T)[None, :] < lengths[:, None]
    token_ids = jnp.where(pad_mask, token_ids, 0)

    sample_id = jnp.arange(B)
    out = model.forward(sample_id, token_ids)
    jax.block_until_ready(out["logits"])

    # Correctness check against a pure-JAX reference with matching numerics.
    ref_enc, ref_logits = _reference_forward(model, token_ids)
    np.testing.assert_allclose(np.asarray(out["encodings"]),
                               np.asarray(ref_enc), rtol=2e-3, atol=2e-3)
    np.testing.assert_allclose(np.asarray(out["logits"]),
                               np.asarray(ref_logits), rtol=2e-3, atol=2e-3)
    assert out["predictions"].shape == (B,)
    assert out["no_answer_probability"].shape == (B,)

    # Exercise the loss branch.
    labels = jnp.arange(B) % N_CLASSES
    out_l = model.forward(sample_id, token_ids, label=labels)
    jax.block_until_ready(out_l["loss"])
    assert np.isfinite(float(out_l["loss"]))

    print("KERNEL_OK")
</pallas_src>

<mosaic_0001>
module attributes {stable_mosaic.version = 11 : i64} {
  func.func @_lstm_kernel(%arg0: i32, %arg1: memref<8x8x128xf32, #tpu.memory_space<vmem>>, %arg2: memref<128x512xbf16, #tpu.memory_space<vmem>>, %arg3: memref<128x512xbf16, #tpu.memory_space<vmem>>, %arg4: memref<1x512xf32, #tpu.memory_space<vmem>>, %arg5: memref<8x8x128xf32, #tpu.memory_space<vmem>>, %arg6: memref<8x8x512xf32, #tpu.memory_space<vmem>>) attributes {dimension_semantics = [#tpu.dimension_semantics<parallel>], iteration_bounds = array<i64: 2>, scalar_prefetch = 0 : i64, scratch_operands = 1 : i64, tpu.core_type = #tpu.core_type<tc>, window_params = [{transform_indices = @transform_0, window_bounds = array<i64: 8, 8, 128>}, {pipeline_mode = #tpu.pipeline_mode<synchronous>, transform_indices = @transform_1, window_bounds = array<i64: 128, 512>}, {pipeline_mode = #tpu.pipeline_mode<synchronous>, transform_indices = @transform_2, window_bounds = array<i64: 128, 512>}, {pipeline_mode = #tpu.pipeline_mode<synchronous>, transform_indices = @transform_3, window_bounds = array<i64: 1, 512>}, {transform_indices = @transform_4, window_bounds = array<i64: 8, 8, 128>}]} {
    %c0 = arith.constant 0 : index
    %c0_0 = arith.constant 0 : index
    %c0_1 = arith.constant 0 : index
    %0 = vector.load %arg1[%c0, %c0_0, %c0_1] : memref<8x8x128xf32, #tpu.memory_space<vmem>>, vector<8x8x128xf32>
    %1 = vector.shape_cast %0 : vector<8x8x128xf32> to vector<64x128xf32>
    %2 = arith.truncf %1 : vector<64x128xf32> to vector<64x128xbf16>
    %c0_2 = arith.constant 0 : index
    %c0_3 = arith.constant 0 : index
    %3 = vector.load %arg2[%c0_2, %c0_3] : memref<128x512xbf16, #tpu.memory_space<vmem>>, vector<128x512xbf16>
    %cst = arith.constant dense<0.000000e+00> : vector<64x512xf32>
    %4 = tpu.matmul %2, %3, %cst {dimension_numbers = #tpu.dot_dimension_numbers<[1], [0], [0], [1], [0, 0, 1, 1], [], []>} : vector<64x128xbf16>, vector<128x512xbf16>, vector<64x512xf32> -> vector<64x512xf32>
    %c0_4 = arith.constant 0 : index
    %c0_5 = arith.constant 0 : index
    %5 = vector.load %arg4[%c0_4, %c0_5] : memref<1x512xf32, #tpu.memory_space<vmem>>, vector<1x512xf32>
    %6 = vector.broadcast %5 : vector<1x512xf32> to vector<64x512xf32>
    %7 = arith.addf %4, %6 : vector<64x512xf32>
    %8 = vector.shape_cast %7 : vector<64x512xf32> to vector<8x8x512xf32>
    %c0_6 = arith.constant 0 : index
    %c0_7 = arith.constant 0 : index
    %c0_8 = arith.constant 0 : index
    %9 = vector.load %arg6[%c0_6, %c0_7, %c0_8] : memref<8x8x512xf32, #tpu.memory_space<vmem>>, vector<8x8x512xf32>
    tpu.vector_store %arg6[%c0_6, %c0_7, %c0_8], %8 {strides = array<i32>} : memref<8x8x512xf32, #tpu.memory_space<vmem>>, vector<8x8x512xf32>,
    %cst_9 = arith.constant 0.000000e+00 : f32
    %10 = vector.broadcast %cst_9 : f32 to vector<8x128xf32>
    %c0_10 = arith.constant 0 : index
    %c0_11 = arith.constant 0 : index
    %c0_12 = arith.constant 0 : index
    %11 = vector.load %arg6[%c0_10, %c0_11, %c0_12] : memref<8x8x512xf32, #tpu.memory_space<vmem>>, vector<1x8x512xf32>
    %12 = vector.shape_cast %11 : vector<1x8x512xf32> to vector<8x512xf32>
    %13 = vector.extract_strided_slice %12 {offsets = [0, 0], sizes = [8, 128], strides = [1, 1]} : vector<8x512xf32> to vector<8x128xf32>
    %14 = arith.negf %13 : vector<8x128xf32>
    %15 = math.exp %14 : vector<8x128xf32>
    %cst_13 = arith.constant 1.000000e+00 : f32
    %16 = vector.broadcast %cst_13 : f32 to vector<8x128xf32>
    %17 = arith.addf %16, %15 : vector<8x128xf32>
    %18 = arith.divf %16, %17 : vector<8x128xf32>
    %19 = vector.extract_strided_slice %12 {offsets = [0, 128], sizes = [8, 128], strides = [1, 1]} : vector<8x512xf32> to vector<8x128xf32>
    %20 = arith.negf %19 : vector<8x128xf32>
    %21 = math.exp %20 : vector<8x128xf32>
    %cst_14 = arith.constant 1.000000e+00 : f32
    %22 = vector.broadcast %cst_14 : f32 to vector<8x128xf32>
    %23 = arith.addf %22, %21 : vector<8x128xf32>
    %24 = arith.divf %22, %23 : vector<8x128xf32>
    %25 = vector.extract_strided_slice %12 {offsets = [0, 256], sizes = [8, 128], strides = [1, 1]} : vector<8x512xf32> to vector<8x128xf32>
    %26 = math.tanh %25 : vector<8x128xf32>
    %27 = vector.extract_strided_slice %12 {offsets = [0, 384], sizes = [8, 128], strides = [1, 1]} : vector<8x512xf32> to vector<8x128xf32>
    %28 = arith.negf %27 : vector<8x128xf32>
    %29 = math.exp %28 : vector<8x128xf32>
    %cst_15 = arith.constant 1.000000e+00 : f32
    %30 = vector.broadcast %cst_15 : f32 to vector<8x128xf32>
    %31 = arith.addf %30, %29 : vector<8x128xf32>
    %32 = arith.divf %30, %31 : vector<8x128xf32>
    %33 = arith.mulf %24, %10 : vector<8x128xf32>
    %34 = arith.mulf %18, %26 : vector<8x128xf32>
    %35 = arith.addf %33, %34 : vector<8x128xf32>
    %36 = math.tanh %35 : vector<8x128xf32>
    %37 = arith.mulf %32, %36 : vector<8x128xf32>
    %c0_16 = arith.constant 0 : index
    %c0_17 = arith.constant 0 : index
    %c0_18 = arith.constant 0 : index
    %38 = vector.load %arg5[%c0_16, %c0_17, %c0_18] : memref<8x8x128xf32, #tpu.memory_space<vmem>>, vector<1x8x128xf32>
    %39 = vector.shape_cast %38 : vector<1x8x128xf32> to vector<8x128xf32>
    %40 = vector.shape_cast %37 : vector<8x128xf32> to vector<1x8x128xf32>
    tpu.vector_store %arg5[%c0_16, %c0_17, %c0_18], %40 {strides = array<i32>} : memref<8x8x128xf32, #tpu.memory_space<vmem>>, vector<1x8x128xf32>,
    %c1 = arith.constant 1 : index
    %c0_19 = arith.constant 0 : index
    %c0_20 = arith.constant 0 : index
    %41 = vector.load %arg6[%c1, %c0_19, %c0_20] : memref<8x8x512xf32, #tpu.memory_space<vmem>>, vector<1x8x512xf32>
    %42 = vector.shape_cast %41 : vector<1x8x512xf32> to vector<8x512xf32>
    %43 = arith.truncf %37 : vector<8x128xf32> to vector<8x128xbf16>
    %c0_21 = arith.constant 0 : index
    %c0_22 = arith.constant 0 : index
    %44 = vector.load %arg3[%c0_21, %c0_22] : memref<128x512xbf16, #tpu.memory_space<vmem>>, vector<128x512xbf16>
    %cst_23 = arith.constant dense<0.000000e+00> : vector<8x512xf32>
    %45 = tpu.matmul %43, %44, %cst_23 {dimension_numbers = #tpu.dot_dimension_numbers<[1], [0], [0], [1], [0, 0, 1, 1], [], []>} : vector<8x128xbf16>, vector<128x512xbf16>, vector<8x512xf32> -> vector<8x512xf32>
    %46 = arith.addf %42, %45 : vector<8x512xf32>
    %47 = vector.extract_strided_slice %46 {offsets = [0, 0], sizes = [8, 128], strides = [1, 1]} : vector<8x512xf32> to vector<8x128xf32>
    %48 = arith.negf %47 : vector<8x128xf32>
    %49 = math.exp %48 : vector<8x128xf32>
    %cst_24 = arith.constant 1.000000e+00 : f32
    %50 = vector.broadcast %cst_24 : f32 to vector<8x128xf32>
    %51 = arith.addf %50, %49 : vector<8x128xf32>
    %52 = arith.divf %50, %51 : vector<8x128xf32>
    %53 = vector.extract_strided_slice %46 {offsets = [0, 128], sizes = [8, 128], strides = [1, 1]} : vector<8x512xf32> to vector<8x128xf32>
    %54 = arith.negf %53 : vector<8x128xf32>
    %55 = math.exp %54 : vector<8x128xf32>
    %cst_25 = arith.constant 1.000000e+00 : f32
    %56 = vector.broadcast %cst_25 : f32 to vector<8x128xf32>
    %57 = arith.addf %56, %55 : vector<8x128xf32>
    %58 = arith.divf %56, %57 : vector<8x128xf32>
    %59 = vector.extract_strided_slice %46 {offsets = [0, 256], sizes = [8, 128], strides = [1, 1]} : vector<8x512xf32> to vector<8x128xf32>
    %60 = math.tanh %59 : vector<8x128xf32>
    %61 = vector.extract_strided_slice %46 {offsets = [0, 384], sizes = [8, 128], strides = [1, 1]} : vector<8x512xf32> to vector<8x128xf32>
    %62 = arith.negf %61 : vector<8x128xf32>
    %63 = math.exp %62 : vector<8x128xf32>
    %cst_26 = arith.constant 1.000000e+00 : f32
    %64 = vector.broadcast %cst_26 : f32 to vector<8x128xf32>
    %65 = arith.addf %64, %63 : vector<8x128xf32>
    %66 = arith.divf %64, %65 : vector<8x128xf32>
    %67 = arith.mulf %58, %35 : vector<8x128xf32>
    %68 = arith.mulf %52, %60 : vector<8x128xf32>
    %69 = arith.addf %67, %68 : vector<8x128xf32>
    %70 = math.tanh %69 : vector<8x128xf32>
    %71 = arith.mulf %66, %70 : vector<8x128xf32>
    %c1_27 = arith.constant 1 : index
    %c0_28 = arith.constant 0 : index
    %c0_29 = arith.constant 0 : index
    %72 = vector.load %arg5[%c1_27, %c0_28, %c0_29] : memref<8x8x128xf32, #tpu.memory_space<vmem>>, vector<1x8x128xf32>
    %73 = vector.shape_cast %72 : vector<1x8x128xf32> to vector<8x128xf32>
    %74 = vector.shape_cast %71 : vector<8x128xf32> to vector<1x8x128xf32>
    tpu.vector_store %arg5[%c1_27, %c0_28, %c0_29], %74 {strides = array<i32>} : memref<8x8x128xf32, #tpu.memory_space<vmem>>, vector<1x8x128xf32>,
    %c2 = arith.constant 2 : index
    %c0_30 = arith.constant 0 : index
    %c0_31 = arith.constant 0 : index
    %75 = vector.load %arg6[%c2, %c0_30, %c0_31] : memref<8x8x512xf32, #tpu.memory_space<vmem>>, vector<1x8x512xf32>
    %76 = vector.shape_cast %75 : vector<1x8x512xf32> to vector<8x512xf32>
    %77 = arith.truncf %71 : vector<8x128xf32> to vector<8x128xbf16>
    %c0_32 = arith.constant 0 : index
    %c0_33 = arith.constant 0 : index
    %78 = vector.load %arg3[%c0_32, %c0_33] : memref<128x512xbf16, #tpu.memory_space<vmem>>, vector<128x512xbf16>
    %cst_34 = arith.constant dense<0.000000e+00> : vector<8x512xf32>
    %79 = tpu.matmul %77, %78, %cst_34 {dimension_numbers = #tpu.dot_dimension_numbers<[1], [0], [0], [1], [0, 0, 1, 1], [], []>} : vector<8x128xbf16>, vector<128x512xbf16>, vector<8x512xf32> -> vector<8x512xf32>
    %80 = arith.addf %76, %79 : vector<8x512xf32>
    %81 = vector.extract_strided_slice %80 {offsets = [0, 0], sizes = [8, 128], strides = [1, 1]} : vector<8x512xf32> to vector<8x128xf32>
    %82 = arith.negf %81 : vector<8x128xf32>
    %83 = math.exp %82 : vector<8x128xf32>
    %cst_35 = arith.constant 1.000000e+00 : f32
    %84 = vector.broadcast %cst_35 : f32 to vector<8x128xf32>
    %85 = arith.addf %84, %83 : vector<8x128xf32>
    %86 = arith.divf %84, %85 : vector<8x128xf32>
    %87 = vector.extract_strided_slice %80 {offsets = [0, 128], sizes = [8, 128], strides = [1, 1]} : vector<8x512xf32> to vector<8x128xf32>
    %88 = arith.negf %87 : vector<8x128xf32>
    %89 = math.exp %88 : vector<8x128xf32>
    %cst_36 = arith.constant 1.000000e+00 : f32
    %90 = vector.broadcast %cst_36 : f32 to vector<8x128xf32>
    %91 = arith.addf %90, %89 : vector<8x128xf32>
    %92 = arith.divf %90, %91 : vector<8x128xf32>
    %93 = vector.extract_strided_slice %80 {offsets = [0, 256], sizes = [8, 128], strides = [1, 1]} : vector<8x512xf32> to vector<8x128xf32>
    %94 = math.tanh %93 : vector<8x128xf32>
    %95 = vector.extract_strided_slice %80 {offsets = [0, 384], sizes = [8, 128], strides = [1, 1]} : vector<8x512xf32> to vector<8x128xf32>
    %96 = arith.negf %95 : vector<8x128xf32>
    %97 = math.exp %96 : vector<8x128xf32>
    %cst_37 = arith.constant 1.000000e+00 : f32
    %98 = vector.broadcast %cst_37 : f32 to vector<8x128xf32>
    %99 = arith.addf %98, %97 : vector<8x128xf32>
    %100 = arith.divf %98, %99 : vector<8x128xf32>
    %101 = arith.mulf %92, %69 : vector<8x128xf32>
    %102 = arith.mulf %86, %94 : vector<8x128xf32>
    %103 = arith.addf %101, %102 : vector<8x128xf32>
    %104 = math.tanh %103 : vector<8x128xf32>
    %105 = arith.mulf %100, %104 : vector<8x128xf32>
    %c2_38 = arith.constant 2 : index
    %c0_39 = arith.constant 0 : index
    %c0_40 = arith.constant 0 : index
    %106 = vector.load %arg5[%c2_38, %c0_39, %c0_40] : memref<8x8x128xf32, #tpu.memory_space<vmem>>, vector<1x8x128xf32>
    %107 = vector.shape_cast %106 : vector<1x8x128xf32> to vector<8x128xf32>
    %108 = vector.shape_cast %105 : vector<8x128xf32> to vector<1x8x128xf32>
    tpu.vector_store %arg5[%c2_38, %c0_39, %c0_40], %108 {strides = array<i32>} : memref<8x8x128xf32, #tpu.memory_space<vmem>>, vector<1x8x128xf32>,
    %c3 = arith.constant 3 : index
    %c0_41 = arith.constant 0 : index
    %c0_42 = arith.constant 0 : index
    %109 = vector.load %arg6[%c3, %c0_41, %c0_42] : memref<8x8x512xf32, #tpu.memory_space<vmem>>, vector<1x8x512xf32>
    %110 = vector.shape_cast %109 : vector<1x8x512xf32> to vector<8x512xf32>
    %111 = arith.truncf %105 : vector<8x128xf32> to vector<8x128xbf16>
    %c0_43 = arith.constant 0 : index
    %c0_44 = arith.constant 0 : index
    %112 = vector.load %arg3[%c0_43, %c0_44] : memref<128x512xbf16, #tpu.memory_space<vmem>>, vector<128x512xbf16>
    %cst_45 = arith.constant dense<0.000000e+00> : vector<8x512xf32>
    %113 = tpu.matmul %111, %112, %cst_45 {dimension_numbers = #tpu.dot_dimension_numbers<[1], [0], [0], [1], [0, 0, 1, 1], [], []>} : vector<8x128xbf16>, vector<128x512xbf16>, vector<8x512xf32> -> vector<8x512xf32>
    %114 = arith.addf %110, %113 : vector<8x512xf32>
    %115 = vector.extract_strided_slice %114 {offsets = [0, 0], sizes = [8, 128], strides = [1, 1]} : vector<8x512xf32> to vector<8x128xf32>
    %116 = arith.negf %115 : vector<8x128xf32>
    %117 = math.exp %116 : vector<8x128xf32>
    %cst_46 = arith.constant 1.000000e+00 : f32
    %118 = vector.broadcast %cst_46 : f32 to vector<8x128xf32>
    %119 = arith.addf %118, %117 : vector<8x128xf32>
    %120 = arith.divf %118, %119 : vector<8x128xf32>
    %121 = vector.extract_strided_slice %114 {offsets = [0, 128], sizes = [8, 128], strides = [1, 1]} : vector<8x512xf32> to vector<8x128xf32>
    %122 = arith.negf %121 : vector<8x128xf32>
    %123 = math.exp %122 : vector<8x128xf32>
    %cst_47 = arith.constant 1.000000e+00 : f32
    %124 = vector.broadcast %cst_47 : f32 to vector<8x128xf32>
    %125 = arith.addf %124, %123 : vector<8x128xf32>
    %126 = arith.divf %124, %125 : vector<8x128xf32>
    %127 = vector.extract_strided_slice %114 {offsets = [0, 256], sizes = [8, 128], strides = [1, 1]} : vector<8x512xf32> to vector<8x128xf32>
    %128 = math.tanh %127 : vector<8x128xf32>
    %129 = vector.extract_strided_slice %114 {offsets = [0, 384], sizes = [8, 128], strides = [1, 1]} : vector<8x512xf32> to vector<8x128xf32>
    %130 = arith.negf %129 : vector<8x128xf32>
    %131 = math.exp %130 : vector<8x128xf32>
    %cst_48 = arith.constant 1.000000e+00 : f32
    %132 = vector.broadcast %cst_48 : f32 to vector<8x128xf32>
    %133 = arith.addf %132, %131 : vector<8x128xf32>
    %134 = arith.divf %132, %133 : vector<8x128xf32>
    %135 = arith.mulf %126, %103 : vector<8x128xf32>
    %136 = arith.mulf %120, %128 : vector<8x128xf32>
    %137 = arith.addf %135, %136 : vector<8x128xf32>
    %138 = math.tanh %137 : vector<8x128xf32>
    %139 = arith.mulf %134, %138 : vector<8x128xf32>
    %c3_49 = arith.constant 3 : index
    %c0_50 = arith.constant 0 : index
    %c0_51 = arith.constant 0 : index
    %140 = vector.load %arg5[%c3_49, %c0_50, %c0_51] : memref<8x8x128xf32, #tpu.memory_space<vmem>>, vector<1x8x128xf32>
    %141 = vector.shape_cast %140 : vector<1x8x128xf32> to vector<8x128xf32>
    %142 = vector.shape_cast %139 : vector<8x128xf32> to vector<1x8x128xf32>
    tpu.vector_store %arg5[%c3_49, %c0_50, %c0_51], %142 {strides = array<i32>} : memref<8x8x128xf32, #tpu.memory_space<vmem>>, vector<1x8x128xf32>,
    %c4 = arith.constant 4 : index
    %c0_52 = arith.constant 0 : index
    %c0_53 = arith.constant 0 : index
    %143 = vector.load %arg6[%c4, %c0_52, %c0_53] : memref<8x8x512xf32, #tpu.memory_space<vmem>>, vector<1x8x512xf32>
    %144 = vector.shape_cast %143 : vector<1x8x512xf32> to vector<8x512xf32>
    %145 = arith.truncf %139 : vector<8x128xf32> to vector<8x128xbf16>
    %c0_54 = arith.constant 0 : index
    %c0_55 = arith.constant 0 : index
    %146 = vector.load %arg3[%c0_54, %c0_55] : memref<128x512xbf16, #tpu.memory_space<vmem>>, vector<128x512xbf16>
    %cst_56 = arith.constant dense<0.000000e+00> : vector<8x512xf32>
    %147 = tpu.matmul %145, %146, %cst_56 {dimension_numbers = #tpu.dot_dimension_numbers<[1], [0], [0], [1], [0, 0, 1, 1], [], []>} : vector<8x128xbf16>, vector<128x512xbf16>, vector<8x512xf32> -> vector<8x512xf32>
    %148 = arith.addf %144, %147 : vector<8x512xf32>
    %149 = vector.extract_strided_slice %148 {offsets = [0, 0], sizes = [8, 128], strides = [1, 1]} : vector<8x512xf32> to vector<8x128xf32>
    %150 = arith.negf %149 : vector<8x128xf32>
    %151 = math.exp %150 : vector<8x128xf32>
    %cst_57 = arith.constant 1.000000e+00 : f32
    %152 = vector.broadcast %cst_57 : f32 to vector<8x128xf32>
    %153 = arith.addf %152, %151 : vector<8x128xf32>
    %154 = arith.divf %152, %153 : vector<8x128xf32>
    %155 = vector.extract_strided_slice %148 {offsets = [0, 128], sizes = [8, 128], strides = [1, 1]} : vector<8x512xf32> to vector<8x128xf32>
    %156 = arith.negf %155 : vector<8x128xf32>
    %157 = math.exp %156 : vector<8x128xf32>
    %cst_58 = arith.constant 1.000000e+00 : f32
    %158 = vector.broadcast %cst_58 : f32 to vector<8x128xf32>
    %159 = arith.addf %158, %157 : vector<8x128xf32>
    %160 = arith.divf %158, %159 : vector<8x128xf32>
    %161 = vector.extract_strided_slice %148 {offsets = [0, 256], sizes = [8, 128], strides = [1, 1]} : vector<8x512xf32> to vector<8x128xf32>
    %162 = math.tanh %161 : vector<8x128xf32>
    %163 = vector.extract_strided_slice %148 {offsets = [0, 384], sizes = [8, 128], strides = [1, 1]} : vector<8x512xf32> to vector<8x128xf32>
    %164 = arith.negf %163 : vector<8x128xf32>
    %165 = math.exp %164 : vector<8x128xf32>
    %cst_59 = arith.constant 1.000000e+00 : f32
    %166 = vector.broadcast %cst_59 : f32 to vector<8x128xf32>
    %167 = arith.addf %166, %165 : vector<8x128xf32>
    %168 = arith.divf %166, %167 : vector<8x128xf32>
    %169 = arith.mulf %160, %137 : vector<8x128xf32>
    %170 = arith.mulf %154, %162 : vector<8x128xf32>
    %171 = arith.addf %169, %170 : vector<8x128xf32>
    %172 = math.tanh %171 : vector<8x128xf32>
    %173 = arith.mulf %168, %172 : vector<8x128xf32>
    %c4_60 = arith.constant 4 : index
    %c0_61 = arith.constant 0 : index
    %c0_62 = arith.constant 0 : index
    %174 = vector.load %arg5[%c4_60, %c0_61, %c0_62] : memref<8x8x128xf32, #tpu.memory_space<vmem>>, vector<1x8x128xf32>
    %175 = vector.shape_cast %174 : vector<1x8x128xf32> to vector<8x128xf32>
    %176 = vector.shape_cast %173 : vector<8x128xf32> to vector<1x8x128xf32>
    tpu.vector_store %arg5[%c4_60, %c0_61, %c0_62], %176 {strides = array<i32>} : memref<8x8x128xf32, #tpu.memory_space<vmem>>, vector<1x8x128xf32>,
    %c5 = arith.constant 5 : index
    %c0_63 = arith.constant 0 : index
    %c0_64 = arith.constant 0 : index
    %177 = vector.load %arg6[%c5, %c0_63, %c0_64] : memref<8x8x512xf32, #tpu.memory_space<vmem>>, vector<1x8x512xf32>
    %178 = vector.shape_cast %177 : vector<1x8x512xf32> to vector<8x512xf32>
    %179 = arith.truncf %173 : vector<8x128xf32> to vector<8x128xbf16>
    %c0_65 = arith.constant 0 : index
    %c0_66 = arith.constant 0 : index
    %180 = vector.load %arg3[%c0_65, %c0_66] : memref<128x512xbf16, #tpu.memory_space<vmem>>, vector<128x512xbf16>
    %cst_67 = arith.constant dense<0.000000e+00> : vector<8x512xf32>
    %181 = tpu.matmul %179, %180, %cst_67 {dimension_numbers = #tpu.dot_dimension_numbers<[1], [0], [0], [1], [0, 0, 1, 1], [], []>} : vector<8x128xbf16>, vector<128x512xbf16>, vector<8x512xf32> -> vector<8x512xf32>
    %182 = arith.addf %178, %181 : vector<8x512xf32>
    %183 = vector.extract_strided_slice %182 {offsets = [0, 0], sizes = [8, 128], strides = [1, 1]} : vector<8x512xf32> to vector<8x128xf32>
    %184 = arith.negf %183 : vector<8x128xf32>
    %185 = math.exp %184 : vector<8x128xf32>
    %cst_68 = arith.constant 1.000000e+00 : f32
    %186 = vector.broadcast %cst_68 : f32 to vector<8x128xf32>
    %187 = arith.addf %186, %185 : vector<8x128xf32>
    %188 = arith.divf %186, %187 : vector<8x128xf32>
    %189 = vector.extract_strided_slice %182 {offsets = [0, 128], sizes = [8, 128], strides = [1, 1]} : vector<8x512xf32> to vector<8x128xf32>
    %190 = arith.negf %189 : vector<8x128xf32>
    %191 = math.exp %190 : vector<8x128xf32>
    %cst_69 = arith.constant 1.000000e+00 : f32
    %192 = vector.broadcast %cst_69 : f32 to vector<8x128xf32>
    %193 = arith.addf %192, %191 : vector<8x128xf32>
    %194 = arith.divf %192, %193 : vector<8x128xf32>
    %195 = vector.extract_strided_slice %182 {offsets = [0, 256], sizes = [8, 128], strides = [1, 1]} : vector<8x512xf32> to vector<8x128xf32>
    %196 = math.tanh %195 : vector<8x128xf32>
    %197 = vector.extract_strided_slice %182 {offsets = [0, 384], sizes = [8, 128], strides = [1, 1]} : vector<8x512xf32> to vector<8x128xf32>
    %198 = arith.negf %197 : vector<8x128xf32>
    %199 = math.exp %198 : vector<8x128xf32>
    %cst_70 = arith.constant 1.000000e+00 : f32
    %200 = vector.broadcast %cst_70 : f32 to vector<8x128xf32>
    %201 = arith.addf %200, %199 : vector<8x128xf32>
    %202 = arith.divf %200, %201 : vector<8x128xf32>
    %203 = arith.mulf %194, %171 : vector<8x128xf32>
    %204 = arith.mulf %188, %196 : vector<8x128xf32>
    %205 = arith.addf %203, %204 : vector<8x128xf32>
    %206 = math.tanh %205 : vector<8x128xf32>
    %207 = arith.mulf %202, %206 : vector<8x128xf32>
    %c5_71 = arith.constant 5 : index
    %c0_72 = arith.constant 0 : index
    %c0_73 = arith.constant 0 : index
    %208 = vector.load %arg5[%c5_71, %c0_72, %c0_73] : memref<8x8x128xf32, #tpu.memory_space<vmem>>, vector<1x8x128xf32>
    %209 = vector.shape_cast %208 : vector<1x8x128xf32> to vector<8x128xf32>
    %210 = vector.shape_cast %207 : vector<8x128xf32> to vector<1x8x128xf32>
    tpu.vector_store %arg5[%c5_71, %c0_72, %c0_73], %210 {strides = array<i32>} : memref<8x8x128xf32, #tpu.memory_space<vmem>>, vector<1x8x128xf32>,
    %c6 = arith.constant 6 : index
    %c0_74 = arith.constant 0 : index
    %c0_75 = arith.constant 0 : index
    %211 = vector.load %arg6[%c6, %c0_74, %c0_75] : memref<8x8x512xf32, #tpu.memory_space<vmem>>, vector<1x8x512xf32>
    %212 = vector.shape_cast %211 : vector<1x8x512xf32> to vector<8x512xf32>
    %213 = arith.truncf %207 : vector<8x128xf32> to vector<8x128xbf16>
    %c0_76 = arith.constant 0 : index
    %c0_77 = arith.constant 0 : index
    %214 = vector.load %arg3[%c0_76, %c0_77] : memref<128x512xbf16, #tpu.memory_space<vmem>>, vector<128x512xbf16>
    %cst_78 = arith.constant dense<0.000000e+00> : vector<8x512xf32>
    %215 = tpu.matmul %213, %214, %cst_78 {dimension_numbers = #tpu.dot_dimension_numbers<[1], [0], [0], [1], [0, 0, 1, 1], [], []>} : vector<8x128xbf16>, vector<128x512xbf16>, vector<8x512xf32> -> vector<8x512xf32>
    %216 = arith.addf %212, %215 : vector<8x512xf32>
    %217 = vector.extract_strided_slice %216 {offsets = [0, 0], sizes = [8, 128], strides = [1, 1]} : vector<8x512xf32> to vector<8x128xf32>
    %218 = arith.negf %217 : vector<8x128xf32>
    %219 = math.exp %218 : vector<8x128xf32>
    %cst_79 = arith.constant 1.000000e+00 : f32
    %220 = vector.broadcast %cst_79 : f32 to vector<8x128xf32>
    %221 = arith.addf %220, %219 : vector<8x128xf32>
    %222 = arith.divf %220, %221 : vector<8x128xf32>
    %223 = vector.extract_strided_slice %216 {offsets = [0, 128], sizes = [8, 128], strides = [1, 1]} : vector<8x512xf32> to vector<8x128xf32>
    %224 = arith.negf %223 : vector<8x128xf32>
    %225 = math.exp %224 : vector<8x128xf32>
    %cst_80 = arith.constant 1.000000e+00 : f32
    %226 = vector.broadcast %cst_80 : f32 to vector<8x128xf32>
    %227 = arith.addf %226, %225 : vector<8x128xf32>
    %228 = arith.divf %226, %227 : vector<8x128xf32>
    %229 = vector.extract_strided_slice %216 {offsets = [0, 256], sizes = [8, 128], strides = [1, 1]} : vector<8x512xf32> to vector<8x128xf32>
    %230 = math.tanh %229 : vector<8x128xf32>
    %231 = vector.extract_strided_slice %216 {offsets = [0, 384], sizes = [8, 128], strides = [1, 1]} : vector<8x512xf32> to vector<8x128xf32>
    %232 = arith.negf %231 : vector<8x128xf32>
    %233 = math.exp %232 : vector<8x128xf32>
    %cst_81 = arith.constant 1.000000e+00 : f32
    %234 = vector.broadcast %cst_81 : f32 to vector<8x128xf32>
    %235 = arith.addf %234, %233 : vector<8x128xf32>
    %236 = arith.divf %234, %235 : vector<8x128xf32>
    %237 = arith.mulf %228, %205 : vector<8x128xf32>
    %238 = arith.mulf %222, %230 : vector<8x128xf32>
    %239 = arith.addf %237, %238 : vector<8x128xf32>
    %240 = math.tanh %239 : vector<8x128xf32>
    %241 = arith.mulf %236, %240 : vector<8x128xf32>
    %c6_82 = arith.constant 6 : index
    %c0_83 = arith.constant 0 : index
    %c0_84 = arith.constant 0 : index
    %242 = vector.load %arg5[%c6_82, %c0_83, %c0_84] : memref<8x8x128xf32, #tpu.memory_space<vmem>>, vector<1x8x128xf32>
    %243 = vector.shape_cast %242 : vector<1x8x128xf32> to vector<8x128xf32>
    %244 = vector.shape_cast %241 : vector<8x128xf32> to vector<1x8x128xf32>
    tpu.vector_store %arg5[%c6_82, %c0_83, %c0_84], %244 {strides = array<i32>} : memref<8x8x128xf32, #tpu.memory_space<vmem>>, vector<1x8x128xf32>,
    %c7 = arith.constant 7 : index
    %c0_85 = arith.constant 0 : index
    %c0_86 = arith.constant 0 : index
    %245 = vector.load %arg6[%c7, %c0_85, %c0_86] : memref<8x8x512xf32, #tpu.memory_space<vmem>>, vector<1x8x512xf32>
    %246 = vector.shape_cast %245 : vector<1x8x512xf32> to vector<8x512xf32>
    %247 = arith.truncf %241 : vector<8x128xf32> to vector<8x128xbf16>
    %c0_87 = arith.constant 0 : index
    %c0_88 = arith.constant 0 : index
    %248 = vector.load %arg3[%c0_87, %c0_88] : memref<128x512xbf16, #tpu.memory_space<vmem>>, vector<128x512xbf16>
    %cst_89 = arith.constant dense<0.000000e+00> : vector<8x512xf32>
    %249 = tpu.matmul %247, %248, %cst_89 {dimension_numbers = #tpu.dot_dimension_numbers<[1], [0], [0], [1], [0, 0, 1, 1], [], []>} : vector<8x128xbf16>, vector<128x512xbf16>, vector<8x512xf32> -> vector<8x512xf32>
    %250 = arith.addf %246, %249 : vector<8x512xf32>
    %251 = vector.extract_strided_slice %250 {offsets = [0, 0], sizes = [8, 128], strides = [1, 1]} : vector<8x512xf32> to vector<8x128xf32>
    %252 = arith.negf %251 : vector<8x128xf32>
    %253 = math.exp %252 : vector<8x128xf32>
    %cst_90 = arith.constant 1.000000e+00 : f32
    %254 = vector.broadcast %cst_90 : f32 to vector<8x128xf32>
    %255 = arith.addf %254, %253 : vector<8x128xf32>
    %256 = arith.divf %254, %255 : vector<8x128xf32>
    %257 = vector.extract_strided_slice %250 {offsets = [0, 128], sizes = [8, 128], strides = [1, 1]} : vector<8x512xf32> to vector<8x128xf32>
    %258 = arith.negf %257 : vector<8x128xf32>
    %259 = math.exp %258 : vector<8x128xf32>
    %cst_91 = arith.constant 1.000000e+00 : f32
    %260 = vector.broadcast %cst_91 : f32 to vector<8x128xf32>
    %261 = arith.addf %260, %259 : vector<8x128xf32>
    %262 = arith.divf %260, %261 : vector<8x128xf32>
    %263 = vector.extract_strided_slice %250 {offsets = [0, 256], sizes = [8, 128], strides = [1, 1]} : vector<8x512xf32> to vector<8x128xf32>
    %264 = math.tanh %263 : vector<8x128xf32>
    %265 = vector.extract_strided_slice %250 {offsets = [0, 384], sizes = [8, 128], strides = [1, 1]} : vector<8x512xf32> to vector<8x128xf32>
    %266 = arith.negf %265 : vector<8x128xf32>
    %267 = math.exp %266 : vector<8x128xf32>
    %cst_92 = arith.constant 1.000000e+00 : f32
    %268 = vector.broadcast %cst_92 : f32 to vector<8x128xf32>
    %269 = arith.addf %268, %267 : vector<8x128xf32>
    %270 = arith.divf %268, %269 : vector<8x128xf32>
    %271 = arith.mulf %262, %239 : vector<8x128xf32>
    %272 = arith.mulf %256, %264 : vector<8x128xf32>
    %273 = arith.addf %271, %272 : vector<8x128xf32>
    %274 = math.tanh %273 : vector<8x128xf32>
    %275 = arith.mulf %270, %274 : vector<8x128xf32>
    %c7_93 = arith.constant 7 : index
    %c0_94 = arith.constant 0 : index
    %c0_95 = arith.constant 0 : index
    %276 = vector.load %arg5[%c7_93, %c0_94, %c0_95] : memref<8x8x128xf32, #tpu.memory_space<vmem>>, vector<1x8x128xf32>
    %277 = vector.shape_cast %276 : vector<1x8x128xf32> to vector<8x128xf32>
    %278 = vector.shape_cast %275 : vector<8x128xf32> to vector<1x8x128xf32>
    tpu.vector_store %arg5[%c7_93, %c0_94, %c0_95], %278 {strides = array<i32>} : memref<8x8x128xf32, #tpu.memory_space<vmem>>, vector<1x8x128xf32>,
    return
  }
  func.func @transform_0(%arg0: i32) -> (i32, i32, i32) {
    %c0_i32 = arith.constant 0 : i32
    %c0_i32_0 = arith.constant 0 : i32
    %c0_i32_1 = arith.constant 0 : i32
    return %c0_i32, %arg0, %c0_i32_0 : i32, i32, i32
  }
  func.func @transform_1(%arg0: i32) -> (i32, i32) {
    %c0_i32 = arith.constant 0 : i32
    %c0_i32_0 = arith.constant 0 : i32
    %c0_i32_1 = arith.constant 0 : i32
    return %c0_i32, %c0_i32_0 : i32, i32
  }
  func.func @transform_2(%arg0: i32) -> (i32, i32) {
    %c0_i32 = arith.constant 0 : i32
    %c0_i32_0 = arith.constant 0 : i32
    %c0_i32_1 = arith.constant 0 : i32
    return %c0_i32, %c0_i32_0 : i32, i32
  }
  func.func @transform_3(%arg0: i32) -> (i32, i32) {
    %c0_i32 = arith.constant 0 : i32
    %c0_i32_0 = arith.constant 0 : i32
    %c0_i32_1 = arith.constant 0 : i32
    return %c0_i32, %c0_i32_0 : i32, i32
  }
  func.func @transform_4(%arg0: i32) -> (i32, i32, i32) {
    %c0_i32 = arith.constant 0 : i32
    %c0_i32_0 = arith.constant 0 : i32
    %c0_i32_1 = arith.constant 0 : i32
    return %c0_i32, %arg0, %c0_i32_0 : i32, i32, i32
  }
}

</mosaic_0001>

<llo_original>
// kernel: _run_lstm.1
$region0: #{_run_lstm.1}
  #allocation0 [shape = 'u32[]', space=smem, size = 0x4, offset = 0x4, fixed_abs, tag = 'smem constant byte address 0x4 - core index']
  #allocation1 [shape = 'u32[144,128]{1,0:T(1,128)}', space=vmem, size = 0x12000, scoped, tag = 'internal scratch']
  #allocation2 [shape = 'f32[8,8,512]{2,1,0:T(8,128)}', space=vmem, size = 0x20000, scoped, tag = 'scratch operand']
  %s0 = inlined_call_operand.hbm [shape: f32[8,16,128], index: 0, kind: input, shape index: {}]
  %s1 = inlined_call_operand.hbm [shape: bf16[128,512], index: 1, kind: input, shape index: {}]
  %s2 = inlined_call_operand.hbm [shape: bf16[128,512], index: 2, kind: input, shape index: {}]
  %s3 = inlined_call_operand.vmem [shape: f32[1,512], index: 3, kind: input, shape index: {}]
  %s4 = inlined_call_operand.hbm [shape: f32[8,16,128], index: 4, kind: output, shape index: {}]
  %s5 = sld [smem:[#allocation0]]
  $region61: #{_run_lstm.1} parent=0
    _
  %s7 = ssub.s32 1, %s5
  %s8 = scalar_select 0, %s7, %s5
  $region1: #{_run_lstm.1} parent=0
    #allocation3 [shape = 'u8[65536]{0}', space=vmem, size = 0x10000, scoped, tag = 'input window, operand 0']
    #allocation4 [shape = 's32[2]{0}', space=sflag, size = 0x8, scoped, tag = 'scoped memory for _run_lstm.1']
    #allocation5 [shape = 's32[2]{0}', space=sflag, size = 0x8, scoped, tag = 'scoped memory for _run_lstm.1']
    #allocation6 [shape = 'u8[131072]{0}', space=vmem, size = 0x20000, scoped, tag = 'input window, operand 1, single buffered']
    #allocation7 [shape = 's32[1]{0}', space=sflag, size = 0x4, scoped, tag = 'scoped memory for _run_lstm.1']
    #allocation8 [shape = 'u8[131072]{0}', space=vmem, size = 0x20000, scoped, tag = 'input window, operand 2, single buffered']
    #allocation9 [shape = 'u8[65536]{0}', space=vmem, size = 0x10000, scoped, tag = 'output window, operand 0']
    %9 = vsyncpa [#allocation4], 0
    %s10 = scalar_lea.sflag [#allocation4], 1
    %11 = vsyncpa %s10, 0
    %12 = vsyncpa [#allocation7], 0
    %13 = vsyncpa [#allocation5], 0
    %s14 = scalar_lea.sflag [#allocation5], 1
    %15 = vsyncpa %s14, 0
    loop: start=0, step=1, limit=4
    $region2: #{_run_lstm.1} parent=1 // loop_pre_header
      _
    $region3: #{_run_lstm.1} parent=1 // loop_header
      %s17 = sphi 0, %s21
      %p18 = scmp.ge.s32.totalorder %s17, 4
      %s27 = sphi 0, %s29
      %s30 = sphi 0, %s27
      %s31 = sphi 0, %s30
      %s47 = sphi 0, %s31
      %s51 = sphi 0, %s51
      %s53 = sphi 0, %s51
      %s54 = sphi 0, %s53
      %s68 = sphi 0, %s54
      %s72 = sphi 0, %s72
      %s74 = sphi 0, %s72
      %s75 = sphi 0, %s74
      %s89 = sphi 0, %s75
      %s93 = sphi 0, %s93
      %s95 = sphi 0, %s93
      %s96 = sphi 0, %s95
      %s110 = sphi 0, %s96
      %s116 = sphi 0, %s118
      %s119 = sphi 0, %s116
      %s120 = sphi 0, %s119
      %s136 = sphi 0, %s120
    $region4: #{_run_lstm.1} parent=1 // loop_header_branch
      %20 = sbr.rel (%p18) target = $region8
    $region5: #{_run_lstm.1} parent=1 // loop_body
      %s22 = ssub.s32 %s17, 1
      %s23 = ssub.s32 %s17, 2
      %s24 = sadd.s32 %s17, 1
      %s25 = ssub.s32 %s17, %s24
      %p26 = scmp.eq.s32.totalorder %s25, 0
      %s28 = sadd.s32 %s27, 1
      %s29 = scalar_select %p26, %s27, %s28
      %p32 = pneg %p26
      %p33 = scmp.eq.s32.totalorder %s17, 1
      %p34 = por %p32, %p33
      %p35 = scmp.ne.s32.totalorder %s27, %s30
      %p36 = scmp.eq.s32.totalorder %s17, 0
      %p37 = por %p35, %p36
      %p38 = scmp.ne.s32.totalorder %s27, %s30
      %p39 = scmp.eq.s32.totalorder %s22, 1
      %p40 = por %p38, %p39
      %p41 = scmp.ne.s32.totalorder %s30, %s31
      %p42 = scmp.eq.s32.totalorder %s22, 0
      %p43 = por %p41, %p42
      %p44 = scmp.ne.s32.totalorder %s30, %s31
      %p45 = scmp.eq.s32.totalorder %s23, 1
      %p46 = por %p44, %p45
      %p48 = scmp.ne.s32.totalorder %s31, %s47
      %p49 = scmp.eq.s32.totalorder %s23, 0
      %p50 = por %p48, %p49
      %s52 = sadd.s32 %s51, 1
      %p55 = scmp.eq.s32.totalorder %s17, 1
      %p56 = scmp.ne.s32.totalorder %s51, %s53
      %p57 = scmp.eq.s32.totalorder %s17, 0
      %p58 = por %p56, %p57
      %p59 = scmp.ne.s32.totalorder %s51, %s53
      %p60 = scmp.eq.s32.totalorder %s22, 1
      %p61 = por %p59, %p60
      %p62 = scmp.ne.s32.totalorder %s53, %s54
      %p63 = scmp.eq.s32.totalorder %s22, 0
      %p64 = por %p62, %p63
      %p65 = scmp.ne.s32.totalorder %s53, %s54
      %p66 = scmp.eq.s32.totalorder %s23, 1
      %p67 = por %p65, %p66
      %p69 = scmp.ne.s32.totalorder %s54, %s68
      %p70 = scmp.eq.s32.totalorder %s23, 0
      %p71 = por %p69, %p70
      %s73 = sadd.s32 %s72, 1
      %p76 = scmp.eq.s32.totalorder %s17, 1
      %p77 = scmp.ne.s32.totalorder %s72, %s74
      %p78 = scmp.eq.s32.totalorder %s17, 0
      %p79 = por %p77, %p78
      %p80 = scmp.ne.s32.totalorder %s72, %s74
      %p81 = scmp.eq.s32.totalorder %s22, 1
      %p82 = por %p80, %p81
      %p83 = scmp.ne.s32.totalorder %s74, %s75
      %p84 = scmp.eq.s32.totalorder %s22, 0
      %p85 = por %p83, %p84
      %p86 = scmp.ne.s32.totalorder %s74, %s75
      %p87 = scmp.eq.s32.totalorder %s23, 1
      %p88 = por %p86, %p87
      %p90 = scmp.ne.s32.totalorder %s75, %s89
      %p91 = scmp.eq.s32.totalorder %s23, 0
      %p92 = por %p90, %p91
      %s94 = sadd.s32 %s93, 1
      %p97 = scmp.eq.s32.totalorder %s17, 1
      %p98 = scmp.ne.s32.totalorder %s93, %s95
      %p99 = scmp.eq.s32.totalorder %s17, 0
      %p100 = por %p98, %p99
      %p101 = scmp.ne.s32.totalorder %s93, %s95
      %p102 = scmp.eq.s32.totalorder %s22, 1
      %p103 = por %p101, %p102
      %p104 = scmp.ne.s32.totalorder %s95, %s96
      %p105 = scmp.eq.s32.totalorder %s22, 0
      %p106 = por %p104, %p105
      %p107 = scmp.ne.s32.totalorder %s95, %s96
      %p108 = scmp.eq.s32.totalorder %s23, 1
      %p109 = por %p107, %p108
      %p111 = scmp.ne.s32.totalorder %s96, %s110
      %p112 = scmp.eq.s32.totalorder %s23, 0
      %p113 = por %p111, %p112
      %s114 = ssub.s32 %s17, %s24
      %p115 = scmp.eq.s32.totalorder %s114, 0
      %s117 = sadd.s32 %s116, 1
      %s118 = scalar_select %p115, %s116, %s117
      %p121 = pneg %p115
      %p122 = scmp.eq.s32.totalorder %s17, 1
      %p123 = por %p121, %p122
      %p124 = scmp.ne.s32.totalorder %s116, %s119
      %p125 = scmp.eq.s32.totalorder %s17, 0
      %p126 = por %p124, %p125
      %p127 = scmp.ne.s32.totalorder %s116, %s119
      %p128 = scmp.eq.s32.totalorder %s22, 1
      %p129 = por %p127, %p128
      %p130 = scmp.ne.s32.totalorder %s119, %s120
      %p131 = scmp.eq.s32.totalorder %s22, 0
      %p132 = por %p130, %p131
      %p133 = scmp.ne.s32.totalorder %s119, %s120
      %p134 = scmp.eq.s32.totalorder %s23, 1
      %p135 = por %p133, %p134
      %p137 = scmp.ne.s32.totalorder %s120, %s136
      %p138 = scmp.eq.s32.totalorder %s23, 0
      %p139 = por %p137, %p138
      %p140 = scmp.le.s32.totalorder 1, %s17
      %p141 = scmp.lt.s32.totalorder %s17, 3
      %p142 = pnand %p140, %p141
      %p143 = pneg %p142
      // Predicated region
      $region9: #{_run_lstm.1} parent=5 // pred_check
        _
      $region10: #{_run_lstm.1} parent=5 // pred_check_branch
        %145 = sbr.rel (%p142) target = $region12
      $region11: #{_run_lstm.1} parent=5 // pred_region
        %s146 = ssub.s32 %s17, 1
        // Predicated region
        $region13: #{_run_lstm.1} parent=11 // pred_check
          %p147 = pneg %p64
        $region14: #{_run_lstm.1} parent=11 // pred_check_branch
          %149 = sbr.rel (%p147) target = $region16
        $region15: #{_run_lstm.1} parent=11 // pred_region
          %s151 = ssub.s32 4096, 4096
          %152 = vsyncadd [#allocation7], %s151
          %s153 = sshll.u32 [#allocation6], 4
          %s154 = int_to_ptr.vmem [resolvable:$true] %s153
          %159 = dma.hbm_to_vmem [thread:$0]  %s1, 4096, %s154, [#allocation7], 256, 256, 16
        $region16: #{_run_lstm.1} parent=11 // pred_fallthru
          _
        // Predicated region
        $region17: #{_run_lstm.1} parent=11 // pred_check
          %p160 = pneg %p85
        $region18: #{_run_lstm.1} parent=11 // pred_check_branch
          %162 = sbr.rel (%p160) target = $region20
        $region19: #{_run_lstm.1} parent=11 // pred_region
          %s164 = ssub.s32 4096, 4096
          %165 = vsyncadd [#allocation7], %s164
          %s166 = sshll.u32 [#allocation8], 4
          %s167 = int_to_ptr.vmem [resolvable:$true] %s166
          %172 = dma.hbm_to_vmem [thread:$0]  %s2, 4096, %s167, [#allocation7], 256, 256, 16
        $region20: #{_run_lstm.1} parent=11 // pred_fallthru
          _
        // Predicated region
        $region21: #{_run_lstm.1} parent=11 // pred_check
          %p173 = pneg %p106
        $region22: #{_run_lstm.1} parent=11 // pred_check_branch
          %175 = sbr.rel (%p173) target = $region24
        $region23: #{_run_lstm.1} parent=11 // pred_region
          _
        $region24: #{_run_lstm.1} parent=11 // pred_fallthru
          _
      $region12: #{_run_lstm.1} parent=5 // pred_fallthru
        _
      %p176 = scmp.lt.s32.totalorder %s17, 2
      // Predicated region
      $region25: #{_run_lstm.1} parent=5 // pred_check
        %p177 = pneg %p176
      $region26: #{_run_lstm.1} parent=5 // pred_check_branch
        %179 = sbr.rel (%p177) target = $region28
      $region27: #{_run_lstm.1} parent=5 // pred_region
        // Predicated region
        $region29: #{_run_lstm.1} parent=27 // pred_check
          %p180 = pneg %p37
        $region30: #{_run_lstm.1} parent=27 // pred_check_branch
          %182 = sbr.rel (%p180) target = $region32
        $region31: #{_run_lstm.1} parent=27 // pred_region
          %s183 = sand.u32 %s27, 1
          %s184 = scalar_lea.sflag [#allocation4], %s183
          %s185 = sand.u32 %s27, 1
          %s186 = smul.addr %s185, 64
          %s187 = scalar_lea.vmem [#allocation3], %s186
          %s189 = ssub.s32 1024, 1024
          %190 = vsyncadd %s184, %s189
          %s191 = smul.addr %s17, 128
          %s192 = scalar_lea.hbm %s0, %s191
          %s193 = sshll.u32 %s187, 4
          %s194 = int_to_ptr.vmem [resolvable:$true] %s193
          %199 = dma.hbm_to_vmem [thread:$0]  %s192, 1024, %s194, %s184, 256, 128, 8
        $region32: #{_run_lstm.1} parent=27 // pred_fallthru
          _
      $region28: #{_run_lstm.1} parent=5 // pred_fallthru
        _
      %p200 = scmp.le.s32.totalorder 1, %s17
      %p201 = scmp.lt.s32.totalorder %s17, 3
      %p202 = pnand %p200, %p201
      %p203 = pneg %p202
      // Predicated region
      $region33: #{_run_lstm.1} parent=5 // pred_check
        _
      $region34: #{_run_lstm.1} parent=5 // pred_check_branch
        %205 = sbr.rel (%p202) target = $region36
      $region35: #{_run_lstm.1} parent=5 // pred_region
        %s206 = ssub.s32 %s17, 1
        %s207 = sand.u32 %s30, 1
        %s208 = scalar_lea.sflag [#allocation4], %s207
        %s209 = sand.u32 %s30, 1
        %s210 = smul.addr %s209, 64
        %s211 = scalar_lea.vmem [#allocation3], %s210
        // Predicated region
        $region37: #{_run_lstm.1} parent=35 // pred_check
          %p212 = pneg %p43
        $region38: #{_run_lstm.1} parent=35 // pred_check_branch
          %214 = sbr.rel (%p212) target = $region40
        $region39: #{_run_lstm.1} parent=35 // pred_region
          %215 = dma.done %s208, 1024
        $region40: #{_run_lstm.1} parent=35 // pred_fallthru
          _
        // Predicated region
        $region41: #{_run_lstm.1} parent=35 // pred_check
          %p216 = pneg %p64
        $region42: #{_run_lstm.1} parent=35 // pred_check_branch
          %218 = sbr.rel (%p216) target = $region44
        $region43: #{_run_lstm.1} parent=35 // pred_region
          %219 = dma.done [#allocation7], 4096
        $region44: #{_run_lstm.1} parent=35 // pred_fallthru
          _
        // Predicated region
        $region45: #{_run_lstm.1} parent=35 // pred_check
          %p220 = pneg %p85
        $region46: #{_run_lstm.1} parent=35 // pred_check_branch
          %222 = sbr.rel (%p220) target = $region48
        $region47: #{_run_lstm.1} parent=35 // pred_region
          %223 = dma.done [#allocation7], 4096
        $region48: #{_run_lstm.1} parent=35 // pred_fallthru
          _
        %s224 = sand.u32 %s30, 1
        %s225 = scalar_lea.sflag [#allocation4], %s224
        %s226 = sand.u32 %s30, 1
        %s227 = smul.addr %s226, 64
        %s228 = scalar_lea.vmem [#allocation3], %s227
        %p229 = pneg %p43
        %p230 = pneg %p40
        %p231 = pneg %p64
        %p232 = pneg %p61
        %p233 = pneg %p85
        %p234 = pneg %p82
        %p235 = pneg %p106
        %p236 = pneg %p103
        %p237 = pneg %p132
        %p238 = pneg %p129
        %s239 = sand.u32 %s119, 1
        %s240 = scalar_lea.sflag [#allocation5], %s239
        %s241 = sand.u32 %s119, 1
        %s242 = smul.addr %s241, 64
        %s243 = scalar_lea.vmem [#allocation9], %s242
        %v245 = vld [vmem:[%s211] sm:$0xff]
        %v246 = vld [vmem:[%s211 + $0x8] sm:$0xff]
        %v247 = vld [vmem:[%s211 + $0x10] sm:$0xff]
        %v248 = vld [vmem:[%s211 + $0x18] sm:$0xff]
        %v249 = vld [vmem:[%s211 + $0x20] sm:$0xff]
        %v250 = vld [vmem:[%s211 + $0x28] sm:$0xff]
        %v251 = vld [vmem:[%s211 + $0x30] sm:$0xff]
        %v252 = vld [vmem:[%s211 + $0x38] sm:$0xff]
        %v253 = vpack.c.bf16 %v246, %v245
        %v254 = vpack.c.bf16 %v248, %v247
        %v255 = vpack.c.bf16 %v250, %v249
        %v256 = vpack.c.bf16 %v252, %v251
        %v257 = vld [vmem:[#allocation6] sm:$0xff]
        %v258 = vld [vmem:[#allocation6 + $0x8] sm:$0xff]
        %v259 = vld [vmem:[#allocation6 + $0x10] sm:$0xff]
        %v260 = vld [vmem:[#allocation6 + $0x18] sm:$0xff]
        %v261 = vld [vmem:[#allocation6 + $0x20] sm:$0xff]
        %v262 = vld [vmem:[#allocation6 + $0x28] sm:$0xff]
        %v263 = vld [vmem:[#allocation6 + $0x30] sm:$0xff]
        %v264 = vld [vmem:[#allocation6 + $0x38] sm:$0xff]
        %v265 = vld [vmem:[#allocation6 + $0x40] sm:$0xff]
        %v266 = vld [vmem:[#allocation6 + $0x48] sm:$0xff]
        %v267 = vld [vmem:[#allocation6 + $0x50] sm:$0xff]
        %v268 = vld [vmem:[#allocation6 + $0x58] sm:$0xff]
        %v269 = vld [vmem:[#allocation6 + $0x60] sm:$0xff]
        %v270 = vld [vmem:[#allocation6 + $0x68] sm:$0xff]
        %v271 = vld [vmem:[#allocation6 + $0x70] sm:$0xff]
        %v272 = vld [vmem:[#allocation6 + $0x78] sm:$0xff]
        %v273 = vld [vmem:[#allocation6 + $0x80] sm:$0xff]
        %v274 = vld [vmem:[#allocation6 + $0x88] sm:$0xff]
        %v275 = vld [vmem:[#allocation6 + $0x90] sm:$0xff]
        %v276 = vld [vmem:[#allocation6 + $0x98] sm:$0xff]
        %v277 = vld [vmem:[#allocation6 + $0xa0] sm:$0xff]
        %v278 = vld [vmem:[#allocation6 + $0xa8] sm:$0xff]
        %v279 = vld [vmem:[#allocation6 + $0xb0] sm:$0xff]
        %v280 = vld [vmem:[#allocation6 + $0xb8] sm:$0xff]
        %v281 = vld [vmem:[#allocation6 + $0xc0] sm:$0xff]
        %v282 = vld [vmem:[#allocation6 + $0xc8] sm:$0xff]
        %v283 = vld [vmem:[#allocation6 + $0xd0] sm:$0xff]
        %v284 = vld [vmem:[#allocation6 + $0xd8] sm:$0xff]
        %v285 = vld [vmem:[#allocation6 + $0xe0] sm:$0xff]
        %v286 = vld [vmem:[#allocation6 + $0xe8] sm:$0xff]
        %v287 = vld [vmem:[#allocation6 + $0xf0] sm:$0xff]
        %v288 = vld [vmem:[#allocation6 + $0xf8] sm:$0xff]
        %v289 = vld [vmem:[%s3] sm:$0xf]
        %v291 = vlaneseq
        %v292 = vshrl.u32 %v291, 7
        %v293 = vsub.s32 0, %v292
        %v294 = vrot.slane %v289, %v293
        %v295 = vlaneseq
        %v296 = vshrl.u32 %v295, 7
        %v297 = vsub.s32 1, %v296
        %v298 = vrot.slane %v289, %v297
        %v299 = vlaneseq
        %v300 = vshrl.u32 %v299, 7
        %v301 = vsub.s32 2, %v300
        %v302 = vrot.slane %v289, %v301
        %v303 = vlaneseq
        %v304 = vshrl.u32 %v303, 7
        %v305 = vsub.s32 3, %v304
        %v306 = vrot.slane %v289, %v305
        %v343 = vunpack.c.l.b16 %v257
        %v344 = vunpack.c.h.b16 %v257
        %v345 = vunpack.c.l.b16 %v258
        %v346 = vunpack.c.h.b16 %v258
        %v347 = vunpack.c.l.b16 %v259
        %v348 = vunpack.c.h.b16 %v259
        %v349 = vunpack.c.l.b16 %v260
        %v350 = vunpack.c.h.b16 %v260
        %v351 = vunpack.c.l.b16 %v261
        %v352 = vunpack.c.h.b16 %v261
        %v353 = vunpack.c.l.b16 %v262
        %v354 = vunpack.c.h.b16 %v262
        %v355 = vunpack.c.l.b16 %v263
        %v356 = vunpack.c.h.b16 %v263
        %v357 = vunpack.c.l.b16 %v264
        %v358 = vunpack.c.h.b16 %v264
        %v359 = vunpack.c.l.b16 %v265
        %v360 = vunpack.c.h.b16 %v265
        %v361 = vunpack.c.l.b16 %v266
        %v362 = vunpack.c.h.b16 %v266
        %v363 = vunpack.c.l.b16 %v267
        %v364 = vunpack.c.h.b16 %v267
        %v365 = vunpack.c.l.b16 %v268
        %v366 = vunpack.c.h.b16 %v268
        %v367 = vunpack.c.l.b16 %v269
        %v368 = vunpack.c.h.b16 %v269
        %v369 = vunpack.c.l.b16 %v270
        %v370 = vunpack.c.h.b16 %v270
        %v371 = vunpack.c.l.b16 %v271
        %v372 = vunpack.c.h.b16 %v271
        %v373 = vunpack.c.l.b16 %v272
        %v374 = vunpack.c.h.b16 %v272
        %v375 = vunpack.c.l.b16 %v273
        %v376 = vunpack.c.h.b16 %v273
        %v377 = vunpack.c.l.b16 %v274
        %v378 = vunpack.c.h.b16 %v274
        %v379 = vunpack.c.l.b16 %v275
        %v380 = vunpack.c.h.b16 %v275
        %v381 = vunpack.c.l.b16 %v276
        %v382 = vunpack.c.h.b16 %v276
        %v383 = vunpack.c.l.b16 %v277
        %v384 = vunpack.c.h.b16 %v277
        %v385 = vunpack.c.l.b16 %v278
        %v386 = vunpack.c.h.b16 %v278
        %v387 = vunpack.c.l.b16 %v279
        %v388 = vunpack.c.h.b16 %v279
        %v389 = vunpack.c.l.b16 %v280
        %v390 = vunpack.c.h.b16 %v280
        %v391 = vunpack.c.l.b16 %v281
        %v392 = vunpack.c.h.b16 %v281
        %v393 = vunpack.c.l.b16 %v282
        %v394 = vunpack.c.h.b16 %v282
        %v395 = vunpack.c.l.b16 %v283
        %v396 = vunpack.c.h.b16 %v283
        %v397 = vunpack.c.l.b16 %v284
        %v398 = vunpack.c.h.b16 %v284
        %v399 = vunpack.c.l.b16 %v285
        %v400 = vunpack.c.h.b16 %v285
        %v401 = vunpack.c.l.b16 %v286
        %v402 = vunpack.c.h.b16 %v286
        %v403 = vunpack.c.l.b16 %v287
        %v404 = vunpack.c.h.b16 %v287
        %v405 = vunpack.c.l.b16 %v288
        %v406 = vunpack.c.h.b16 %v288
        %v407 = vpack.c.b16 %v347, %v343
        %v408 = vpack.c.b16 %v348, %v344
        %v409 = vpack.c.b16 %v349, %v345
        %v410 = vpack.c.b16 %v350, %v346
        %v411 = vpack.c.b16 %v355, %v351
        %v412 = vpack.c.b16 %v356, %v352
        %v413 = vpack.c.b16 %v357, %v353
        %v414 = vpack.c.b16 %v358, %v354
        %v415 = vpack.c.b16 %v363, %v359
        %v416 = vpack.c.b16 %v364, %v360
        %v417 = vpack.c.b16 %v365, %v361
        %v418 = vpack.c.b16 %v366, %v362
        %v419 = vpack.c.b16 %v371, %v367
        %v420 = vpack.c.b16 %v372, %v368
        %v421 = vpack.c.b16 %v373, %v369
        %v422 = vpack.c.b16 %v374, %v370
        %v423 = vpack.c.b16 %v379, %v375
        %v424 = vpack.c.b16 %v380, %v376
        %v425 = vpack.c.b16 %v381, %v377
        %v426 = vpack.c.b16 %v382, %v378
        %v427 = vpack.c.b16 %v387, %v383
        %v428 = vpack.c.b16 %v388, %v384
        %v429 = vpack.c.b16 %v389, %v385
        %v430 = vpack.c.b16 %v390, %v386
        %v431 = vpack.c.b16 %v395, %v391
        %v432 = vpack.c.b16 %v396, %v392
        %v433 = vpack.c.b16 %v397, %v393
        %v434 = vpack.c.b16 %v398, %v394
        %v435 = vpack.c.b16 %v403, %v399
        %v436 = vpack.c.b16 %v404, %v400
        %v437 = vpack.c.b16 %v405, %v401
        %v438 = vpack.c.b16 %v406, %v402
        %471 = vmatprep.subr.bf16.mxu0 %v436
        %472 = vmatpush1.bf16.msra.mxu0 %v435
        %473 = vmatprep.subr.bf16.mxu0 %v432
        %474 = vmatpush1.bf16.msra.mxu0 %v431
        %475 = vmatprep.subr.bf16.mxu0 %v428
        %476 = vmatpush1.bf16.msra.mxu0 %v427
        %477 = vmatprep.subr.bf16.mxu0 %v424
        %478 = vmatpush1.bf16.msra.mxu0 %v423
        %479 = vmatprep.subr.bf16.mxu0 %v420
        %480 = vmatpush1.bf16.msra.mxu0 %v419
        %481 = vmatprep.subr.bf16.mxu0 %v416
        %482 = vmatpush1.bf16.msra.mxu0 %v415
        %483 = vmatprep.subr.bf16.mxu0 %v412
        %484 = vmatpush1.bf16.msra.mxu0 %v411
        %485 = vmatprep.subr.bf16.mxu0 %v408
        %486 = vmatpush1.bf16.msra.mxu0 %v407
        %487 = vmatprep.subr.bf16.mxu0 0
        %488 = vmatpush2.bf16.msra.mxu0 0
        %489 = vmatprep.subr.bf16.mxu0 0
        %490 = vmatpush2.bf16.msra.mxu0 0
        %491 = vmatprep.subr.bf16.mxu0 0
        %492 = vmatpush2.bf16.msra.mxu0 0
        %493 = vmatprep.subr.bf16.mxu0 0
        %494 = vmatpush2.bf16.msra.mxu0 0
        %495 = vmatprep.subr.bf16.mxu0 0
        %496 = vmatpush2.bf16.msra.mxu0 0
        %497 = vmatprep.subr.bf16.mxu0 0
        %498 = vmatpush2.bf16.msra.mxu0 0
        %499 = vmatprep.subr.bf16.mxu0 0
        %500 = vmatpush2.bf16.msra.mxu0 0
        %501 = vmatprep.subr.bf16.mxu0 0
        %502 = vmatpush2.bf16.msra.mxu0 0
        %503 = vmatprep.mubr.bf16.mxu0 0
        %504 = vmatmul.mubr.bf16.gmra.mxu0 %v253
        %v505 = vpop.f32.mrf.mxu0
        %v506 = vadd.f32 %v294, %v505
        %v507 = vpop.f32.mrf.mxu0
        %v508 = vadd.f32 %v298, %v507
        %v509 = vpop.f32.mrf.mxu0
        %v510 = vadd.f32 %v294, %v509
        %v511 = vpop.f32.mrf.mxu0
        %v512 = vadd.f32 %v298, %v511
        %513 = vmatprep.mubr.bf16.mxu0 0
        %514 = vmatmul.mubr.bf16.gmra.mxu0 %v254
        %v515 = vpop.f32.mrf.mxu0
        %v516 = vadd.f32 %v294, %v515
        %v517 = vpop.f32.mrf.mxu0
        %v518 = vadd.f32 %v298, %v517
        %v519 = vpop.f32.mrf.mxu0
        %v520 = vadd.f32 %v294, %v519
        %v521 = vpop.f32.mrf.mxu0
        %v522 = vadd.f32 %v298, %v521
        %523 = vmatprep.mubr.bf16.mxu0 0
        %524 = vmatmul.mubr.bf16.gmra.mxu0 %v255
        %v525 = vpop.f32.mrf.mxu0
        %v526 = vadd.f32 %v294, %v525
        %v527 = vpop.f32.mrf.mxu0
        %v528 = vadd.f32 %v298, %v527
        %v529 = vpop.f32.mrf.mxu0
        %v530 = vadd.f32 %v294, %v529
        %v531 = vpop.f32.mrf.mxu0
        %v532 = vadd.f32 %v298, %v531
        %533 = vmatprep.mubr.bf16.mxu0 0
        %534 = vmatmul.mubr.bf16.gmra.mxu0 %v256
        %v535 = vpop.f32.mrf.mxu0
        %v536 = vadd.f32 %v294, %v535
        %v537 = vpop.f32.mrf.mxu0
        %v538 = vadd.f32 %v298, %v537
        %v539 = vpop.f32.mrf.mxu0
        %v540 = vadd.f32 %v294, %v539
        %v541 = vpop.f32.mrf.mxu0
        %v542 = vadd.f32 %v298, %v541
        %543 = vdwg.mxu0
        %544 = vmatprep.subr.bf16.mxu0 %v438
        %545 = vmatpush1.bf16.msra.mxu0 %v437
        %546 = vmatprep.subr.bf16.mxu0 %v434
        %547 = vmatpush1.bf16.msra.mxu0 %v433
        %548 = vmatprep.subr.bf16.mxu0 %v430
        %549 = vmatpush1.bf16.msra.mxu0 %v429
        %550 = vmatprep.subr.bf16.mxu0 %v426
        %551 = vmatpush1.bf16.msra.mxu0 %v425
        %552 = vmatprep.subr.bf16.mxu0 %v422
        %553 = vmatpush1.bf16.msra.mxu0 %v421
        %554 = vmatprep.subr.bf16.mxu0 %v418
        %555 = vmatpush1.bf16.msra.mxu0 %v417
        %556 = vmatprep.subr.bf16.mxu0 %v414
        %557 = vmatpush1.bf16.msra.mxu0 %v413
        %558 = vmatprep.subr.bf16.mxu0 %v410
        %559 = vmatpush1.bf16.msra.mxu0 %v409
        %560 = vmatprep.subr.bf16.mxu0 0
        %561 = vmatpush2.bf16.msra.mxu0 0
        %562 = vmatprep.subr.bf16.mxu0 0
        %563 = vmatpush2.bf16.msra.mxu0 0
        %564 = vmatprep.subr.bf16.mxu0 0
        %565 = vmatpush2.bf16.msra.mxu0 0
        %566 = vmatprep.subr.bf16.mxu0 0
        %567 = vmatpush2.bf16.msra.mxu0 0
        %568 = vmatprep.subr.bf16.mxu0 0
        %569 = vmatpush2.bf16.msra.mxu0 0
        %570 = vmatprep.subr.bf16.mxu0 0
        %571 = vmatpush2.bf16.msra.mxu0 0
        %572 = vmatprep.subr.bf16.mxu0 0
        %573 = vmatpush2.bf16.msra.mxu0 0
        %574 = vmatprep.subr.bf16.mxu0 0
        %575 = vmatpush2.bf16.msra.mxu0 0
        %576 = vmatprep.mubr.bf16.mxu0 0
        %577 = vmatmul.mubr.bf16.gmra.mxu0 %v253
        %v578 = vpop.f32.mrf.mxu0
        %v579 = vadd.f32 %v302, %v578
        %v580 = vpop.f32.mrf.mxu0
        %v581 = vadd.f32 %v306, %v580
        %v582 = vpop.f32.mrf.mxu0
        %v583 = vadd.f32 %v302, %v582
        %v584 = vpop.f32.mrf.mxu0
        %v585 = vadd.f32 %v306, %v584
        %586 = vmatprep.mubr.bf16.mxu0 0
        %587 = vmatmul.mubr.bf16.gmra.mxu0 %v254
        %v588 = vpop.f32.mrf.mxu0
        %v589 = vadd.f32 %v302, %v588
        %v590 = vpop.f32.mrf.mxu0
        %v591 = vadd.f32 %v306, %v590
        %v592 = vpop.f32.mrf.mxu0
        %v593 = vadd.f32 %v302, %v592
        %v594 = vpop.f32.mrf.mxu0
        %v595 = vadd.f32 %v306, %v594
        %596 = vmatprep.mubr.bf16.mxu0 0
        %597 = vmatmul.mubr.bf16.gmra.mxu0 %v255
        %v598 = vpop.f32.mrf.mxu0
        %v599 = vadd.f32 %v302, %v598
        %v600 = vpop.f32.mrf.mxu0
        %v601 = vadd.f32 %v306, %v600
        %v602 = vpop.f32.mrf.mxu0
        %v603 = vadd.f32 %v302, %v602
        %v604 = vpop.f32.mrf.mxu0
        %v605 = vadd.f32 %v306, %v604
        %606 = vmatprep.mubr.bf16.mxu0 0
        %607 = vmatmul.mubr.bf16.gmra.mxu0 %v256
        %v608 = vpop.f32.mrf.mxu0
        %v609 = vadd.f32 %v302, %v608
        %v610 = vpop.f32.mrf.mxu0
        %v611 = vadd.f32 %v306, %v610
        %v612 = vpop.f32.mrf.mxu0
        %v613 = vadd.f32 %v302, %v612
        %v614 = vpop.f32.mrf.mxu0
        %v615 = vadd.f32 %v306, %v614
        %616 = vdwg.mxu0
        %617 = vst [vmem:[#allocation2] sm:$0xff] %v506
        %618 = vst [vmem:[#allocation2 + $0x8] sm:$0xff] %v508
        %619 = vst [vmem:[#allocation2 + $0x10] sm:$0xff] %v579
        %620 = vst [vmem:[#allocation2 + $0x18] sm:$0xff] %v581
        %621 = vst [vmem:[#allocation2 + $0x20] sm:$0xff] %v510
        %622 = vst [vmem:[#allocation2 + $0x28] sm:$0xff] %v512
        %623 = vst [vmem:[#allocation2 + $0x30] sm:$0xff] %v583
        %624 = vst [vmem:[#allocation2 + $0x38] sm:$0xff] %v585
        %625 = vst [vmem:[#allocation2 + $0x40] sm:$0xff] %v516
        %626 = vst [vmem:[#allocation2 + $0x48] sm:$0xff] %v518
        %627 = vst [vmem:[#allocation2 + $0x50] sm:$0xff] %v589
        %628 = vst [vmem:[#allocation2 + $0x58] sm:$0xff] %v591
        %629 = vst [vmem:[#allocation2 + $0x60] sm:$0xff] %v520
        %630 = vst [vmem:[#allocation2 + $0x68] sm:$0xff] %v522
        %631 = vst [vmem:[#allocation2 + $0x70] sm:$0xff] %v593
        %632 = vst [vmem:[#allocation2 + $0x78] sm:$0xff] %v595
        %633 = vst [vmem:[#allocation2 + $0x80] sm:$0xff] %v526
        %634 = vst [vmem:[#allocation2 + $0x88] sm:$0xff] %v528
        %635 = vst [vmem:[#allocation2 + $0x90] sm:$0xff] %v599
        %636 = vst [vmem:[#allocation2 + $0x98] sm:$0xff] %v601
        %637 = vst [vmem:[#allocation2 + $0xa0] sm:$0xff] %v530
        %638 = vst [vmem:[#allocation2 + $0xa8] sm:$0xff] %v532
        %639 = vst [vmem:[#allocation2 + $0xb0] sm:$0xff] %v603
        %640 = vst [vmem:[#allocation2 + $0xb8] sm:$0xff] %v605
        %641 = vst [vmem:[#allocation2 + $0xc0] sm:$0xff] %v536
        %642 = vst [vmem:[#allocation2 + $0xc8] sm:$0xff] %v538
        %643 = vst [vmem:[#allocation2 + $0xd0] sm:$0xff] %v609
        %644 = vst [vmem:[#allocation2 + $0xd8] sm:$0xff] %v611
        %645 = vst [vmem:[#allocation2 + $0xe0] sm:$0xff] %v540
        %646 = vst [vmem:[#allocation2 + $0xe8] sm:$0xff] %v542
        %647 = vst [vmem:[#allocation2 + $0xf0] sm:$0xff] %v613
        %648 = vst [vmem:[#allocation2 + $0xf8] sm:$0xff] %v615
        %v649 = vld [vmem:[#allocation2] sm:$0xff]
        %v650 = vld [vmem:[#allocation2 + $0x8] sm:$0xff]
        %v651 = vld [vmem:[#allocation2 + $0x10] sm:$0xff]
        %v652 = vld [vmem:[#allocation2 + $0x18] sm:$0xff]
        %v653 = vxor.u32 %v649, 2147483648
        %v654 = vmul.f32 %v653, 1.442695
        %v655 = vpow.pop %v654
        %v656 = vadd.f32 %v655, 1.0
        %v657 = vrcp.pop %v656
        %v658 = vmul.f32 1.0, %v657
        %v659 = vxor.u32 %v650, 2147483648
        %v660 = vmul.f32 %v659, 1.442695
        %v661 = vpow.pop %v660
        %v662 = vadd.f32 %v661, 1.0
        %v663 = vrcp.pop %v662
        %v664 = vmul.f32 1.0, %v663
        %v665 = vtanh.pop %v651
        %v666 = vxor.u32 %v652, 2147483648
        %v667 = vmul.f32 %v666, 1.442695
        %v668 = vpow.pop %v667
        %v669 = vadd.f32 %v668, 1.0
        %v670 = vrcp.pop %v669
        %v671 = vmul.f32 1.0, %v670
        %v672 = vmul.f32 %v664, 0.0
        %v673 = vmul.f32 %v658, %v665
        %v674 = vadd.f32 %v672, %v673
        %v675 = vtanh.pop %v674
        %v676 = vmul.f32 %v671, %v675
        %677 = vst [vmem:[%s243] sm:$0xff] %v676
        %s678 = scalar_lea.vmem [#allocation2], 32
        %v679 = vld [vmem:[%s678] sm:$0xff]
        %v680 = vld [vmem:[%s678 + $0x8] sm:$0xff]
        %v681 = vld [vmem:[%s678 + $0x10] sm:$0xff]
        %v682 = vld [vmem:[%s678 + $0x18] sm:$0xff]
        %v683 = vpack.c.bf16 %v676, %v676
        %v684 = vld [vmem:[#allocation8] sm:$0xff]
        %v685 = vld [vmem:[#allocation8 + $0x8] sm:$0xff]
        %v686 = vld [vmem:[#allocation8 + $0x10] sm:$0xff]
        %v687 = vld [vmem:[#allocation8 + $0x18] sm:$0xff]
        %v688 = vld [vmem:[#allocation8 + $0x20] sm:$0xff]
        %v689 = vld [vmem:[#allocation8 + $0x28] sm:$0xff]
        %v690 = vld [vmem:[#allocation8 + $0x30] sm:$0xff]
        %v691 = vld [vmem:[#allocation8 + $0x38] sm:$0xff]
        %v692 = vld [vmem:[#allocation8 + $0x40] sm:$0xff]
        %v693 = vld [vmem:[#allocation8 + $0x48] sm:$0xff]
        %v694 = vld [vmem:[#allocation8 + $0x50] sm:$0xff]
        %v695 = vld [vmem:[#allocation8 + $0x58] sm:$0xff]
        %v696 = vld [vmem:[#allocation8 + $0x60] sm:$0xff]
        %v697 = vld [vmem:[#allocation8 + $0x68] sm:$0xff]
        %v698 = vld [vmem:[#allocation8 + $0x70] sm:$0xff]
        %v699 = vld [vmem:[#allocation8 + $0x78] sm:$0xff]
        %v700 = vld [vmem:[#allocation8 + $0x80] sm:$0xff]
        %v701 = vld [vmem:[#allocation8 + $0x88] sm:$0xff]
        %v702 = vld [vmem:[#allocation8 + $0x90] sm:$0xff]
        %v703 = vld [vmem:[#allocation8 + $0x98] sm:$0xff]
        %v704 = vld [vmem:[#allocation8 + $0xa0] sm:$0xff]
        %v705 = vld [vmem:[#allocation8 + $0xa8] sm:$0xff]
        %v706 = vld [vmem:[#allocation8 + $0xb0] sm:$0xff]
        %v707 = vld [vmem:[#allocation8 + $0xb8] sm:$0xff]
        %v708 = vld [vmem:[#allocation8 + $0xc0] sm:$0xff]
        %v709 = vld [vmem:[#allocation8 + $0xc8] sm:$0xff]
        %v710 = vld [vmem:[#allocation8 + $0xd0] sm:$0xff]
        %v711 = vld [vmem:[#allocation8 + $0xd8] sm:$0xff]
        %v712 = vld [vmem:[#allocation8 + $0xe0] sm:$0xff]
        %v713 = vld [vmem:[#allocation8 + $0xe8] sm:$0xff]
        %v714 = vld [vmem:[#allocation8 + $0xf0] sm:$0xff]
        %v715 = vld [vmem:[#allocation8 + $0xf8] sm:$0xff]
        %v748 = vunpack.c.l.b16 %v684
        %v749 = vunpack.c.h.b16 %v684
        %v750 = vunpack.c.l.b16 %v685
        %v751 = vunpack.c.h.b16 %v685
        %v752 = vunpack.c.l.b16 %v686
        %v753 = vunpack.c.h.b16 %v686
        %v754 = vunpack.c.l.b16 %v687
        %v755 = vunpack.c.h.b16 %v687
        %v756 = vunpack.c.l.b16 %v688
        %v757 = vunpack.c.h.b16 %v688
        %v758 = vunpack.c.l.b16 %v689
        %v759 = vunpack.c.h.b16 %v689
        %v760 = vunpack.c.l.b16 %v690
        %v761 = vunpack.c.h.b16 %v690
        %v762 = vunpack.c.l.b16 %v691
        %v763 = vunpack.c.h.b16 %v691
        %v764 = vunpack.c.l.b16 %v692
        %v765 = vunpack.c.h.b16 %v692
        %v766 = vunpack.c.l.b16 %v693
        %v767 = vunpack.c.h.b16 %v693
        %v768 = vunpack.c.l.b16 %v694
        %v769 = vunpack.c.h.b16 %v694
        %v770 = vunpack.c.l.b16 %v695
        %v771 = vunpack.c.h.b16 %v695
        %v772 = vunpack.c.l.b16 %v696
        %v773 = vunpack.c.h.b16 %v696
        %v774 = vunpack.c.l.b16 %v697
        %v775 = vunpack.c.h.b16 %v697
        %v776 = vunpack.c.l.b16 %v698
        %v777 = vunpack.c.h.b16 %v698
        %v778 = vunpack.c.l.b16 %v699
        %v779 = vunpack.c.h.b16 %v699
        %v780 = vunpack.c.l.b16 %v700
        %v781 = vunpack.c.h.b16 %v700
        %v782 = vunpack.c.l.b16 %v701
        %v783 = vunpack.c.h.b16 %v701
        %v784 = vunpack.c.l.b16 %v702
        %v785 = vunpack.c.h.b16 %v702
        %v786 = vunpack.c.l.b16 %v703
        %v787 = vunpack.c.h.b16 %v703
        %v788 = vunpack.c.l.b16 %v704
        %v789 = vunpack.c.h.b16 %v704
        %v790 = vunpack.c.l.b16 %v705
        %v791 = vunpack.c.h.b16 %v705
        %v792 = vunpack.c.l.b16 %v706
        %v793 = vunpack.c.h.b16 %v706
        %v794 = vunpack.c.l.b16 %v707
        %v795 = vunpack.c.h.b16 %v707
        %v796 = vunpack.c.l.b16 %v708
        %v797 = vunpack.c.h.b16 %v708
        %v798 = vunpack.c.l.b16 %v709
        %v799 = vunpack.c.h.b16 %v709
        %v800 = vunpack.c.l.b16 %v710
        %v801 = vunpack.c.h.b16 %v710
        %v802 = vunpack.c.l.b16 %v711
        %v803 = vunpack.c.h.b16 %v711
        %v804 = vunpack.c.l.b16 %v712
        %v805 = vunpack.c.h.b16 %v712
        %v806 = vunpack.c.l.b16 %v713
        %v807 = vunpack.c.h.b16 %v713
        %v808 = vunpack.c.l.b16 %v714
        %v809 = vunpack.c.h.b16 %v714
        %v810 = vunpack.c.l.b16 %v715
        %v811 = vunpack.c.h.b16 %v715
        %v812 = vpack.c.b16 %v752, %v748
        %v813 = vpack.c.b16 %v753, %v749
        %v814 = vpack.c.b16 %v754, %v750
        %v815 = vpack.c.b16 %v755, %v751
        %v816 = vpack.c.b16 %v760, %v756
        %v817 = vpack.c.b16 %v761, %v757
        %v818 = vpack.c.b16 %v762, %v758
        %v819 = vpack.c.b16 %v763, %v759
        %v820 = vpack.c.b16 %v768, %v764
        %v821 = vpack.c.b16 %v769, %v765
        %v822 = vpack.c.b16 %v770, %v766
        %v823 = vpack.c.b16 %v771, %v767
        %v824 = vpack.c.b16 %v776, %v772
        %v825 = vpack.c.b16 %v777, %v773
        %v826 = vpack.c.b16 %v778, %v774
        %v827 = vpack.c.b16 %v779, %v775
        %v828 = vpack.c.b16 %v784, %v780
        %v829 = vpack.c.b16 %v785, %v781
        %v830 = vpack.c.b16 %v786, %v782
        %v831 = vpack.c.b16 %v787, %v783
        %v832 = vpack.c.b16 %v792, %v788
        %v833 = vpack.c.b16 %v793, %v789
        %v834 = vpack.c.b16 %v794, %v790
        %v835 = vpack.c.b16 %v795, %v791
        %v836 = vpack.c.b16 %v800, %v796
        %v837 = vpack.c.b16 %v801, %v797
        %v838 = vpack.c.b16 %v802, %v798
        %v839 = vpack.c.b16 %v803, %v799
        %v840 = vpack.c.b16 %v808, %v804
        %v841 = vpack.c.b16 %v809, %v805
        %v842 = vpack.c.b16 %v810, %v806
        %v843 = vpack.c.b16 %v811, %v807
        %876 = vmatprep.subr.bf16.mxu0 %v841
        %877 = vmatpush1.bf16.msra.mxu0 %v840
        %878 = vmatprep.subr.bf16.mxu0 %v837
        %879 = vmatpush1.bf16.msra.mxu0 %v836
        %880 = vmatprep.subr.bf16.mxu0 %v833
        %881 = vmatpush1.bf16.msra.mxu0 %v832
        %882 = vmatprep.subr.bf16.mxu0 %v829
        %883 = vmatpush1.bf16.msra.mxu0 %v828
        %884 = vmatprep.subr.bf16.mxu0 %v825
        %885 = vmatpush1.bf16.msra.mxu0 %v824
        %886 = vmatprep.subr.bf16.mxu0 %v821
        %887 = vmatpush1.bf16.msra.mxu0 %v820
        %888 = vmatprep.subr.bf16.mxu0 %v817
        %889 = vmatpush1.bf16.msra.mxu0 %v816
        %890 = vmatprep.subr.bf16.mxu0 %v813
        %891 = vmatpush1.bf16.msra.mxu0 %v812
        %892 = vmatprep.subr.bf16.mxu0 0
        %893 = vmatpush2.bf16.msra.mxu0 0
        %894 = vmatprep.subr.bf16.mxu0 0
        %895 = vmatpush2.bf16.msra.mxu0 0
        %896 = vmatprep.subr.bf16.mxu0 0
        %897 = vmatpush2.bf16.msra.mxu0 0
        %898 = vmatprep.subr.bf16.mxu0 0
        %899 = vmatpush2.bf16.msra.mxu0 0
        %900 = vmatprep.subr.bf16.mxu0 0
        %901 = vmatpush2.bf16.msra.mxu0 0
        %902 = vmatprep.subr.bf16.mxu0 0
        %903 = vmatpush2.bf16.msra.mxu0 0
        %904 = vmatprep.subr.bf16.mxu0 0
        %905 = vmatpush2.bf16.msra.mxu0 0
        %906 = vmatprep.subr.bf16.mxu0 0
        %907 = vmatpush2.bf16.msra.mxu0 0
        %908 = vmatprep.mubr.bf16.mxu0 0
        %909 = vmatmul.mubr.bf16.gmra.mxu0 %v683
        %v910 = vpop.f32.mrf.mxu0
        %v911 = vadd.f32 0.0, %v910
        %v912 = vpop.f32.mrf.mxu0
        %v913 = vadd.f32 0.0, %v912
        %v914 = vpop.f32.mrf.mxu0
        %v915 = vpop.f32.mrf.mxu0
        %916 = vdwg.mxu0
        %917 = vmatprep.subr.bf16.mxu0 %v843
        %918 = vmatpush1.bf16.msra.mxu0 %v842
        %919 = vmatprep.subr.bf16.mxu0 %v839
        %920 = vmatpush1.bf16.msra.mxu0 %v838
        %921 = vmatprep.subr.bf16.mxu0 %v835
        %922 = vmatpush1.bf16.msra.mxu0 %v834
        %923 = vmatprep.subr.bf16.mxu0 %v831
        %924 = vmatpush1.bf16.msra.mxu0 %v830
        %925 = vmatprep.subr.bf16.mxu0 %v827
        %926 = vmatpush1.bf16.msra.mxu0 %v826
        %927 = vmatprep.subr.bf16.mxu0 %v823
        %928 = vmatpush1.bf16.msra.mxu0 %v822
        %929 = vmatprep.subr.bf16.mxu0 %v819
        %930 = vmatpush1.bf16.msra.mxu0 %v818
        %931 = vmatprep.subr.bf16.mxu0 %v815
        %932 = vmatpush1.bf16.msra.mxu0 %v814
        %933 = vmatprep.subr.bf16.mxu0 0
        %934 = vmatpush2.bf16.msra.mxu0 0
        %935 = vmatprep.subr.bf16.mxu0 0
        %936 = vmatpush2.bf16.msra.mxu0 0
        %937 = vmatprep.subr.bf16.mxu0 0
        %938 = vmatpush2.bf16.msra.mxu0 0
        %939 = vmatprep.subr.bf16.mxu0 0
        %940 = vmatpush2.bf16.msra.mxu0 0
        %941 = vmatprep.subr.bf16.mxu0 0
        %942 = vmatpush2.bf16.msra.mxu0 0
        %943 = vmatprep.subr.bf16.mxu0 0
        %944 = vmatpush2.bf16.msra.mxu0 0
        %945 = vmatprep.subr.bf16.mxu0 0
        %946 = vmatpush2.bf16.msra.mxu0 0
        %947 = vmatprep.subr.bf16.mxu0 0
        %948 = vmatpush2.bf16.msra.mxu0 0
        %949 = vmatprep.mubr.bf16.mxu0 0
        %950 = vmatmul.mubr.bf16.gmra.mxu0 %v683
        %v951 = vpop.f32.mrf.mxu0
        %v952 = vadd.f32 0.0, %v951
        %v953 = vpop.f32.mrf.mxu0
        %v954 = vadd.f32 0.0, %v953
        %v955 = vpop.f32.mrf.mxu0
        %v956 = vpop.f32.mrf.mxu0
        %957 = vdwg.mxu0
        %v958 = vadd.f32 %v679, %v911
        %v959 = vadd.f32 %v680, %v913
        %v960 = vadd.f32 %v681, %v952
        %v961 = vadd.f32 %v682, %v954
        %v962 = vxor.u32 %v958, 2147483648
        %v963 = vmul.f32 %v962, 1.442695
        %v964 = vpow.pop %v963
        %v965 = vadd.f32 %v964, 1.0
        %v966 = vrcp.pop %v965
        %v967 = vmul.f32 1.0, %v966
        %v968 = vxor.u32 %v959, 2147483648
        %v969 = vmul.f32 %v968, 1.442695
        %v970 = vpow.pop %v969
        %v971 = vadd.f32 %v970, 1.0
        %v972 = vrcp.pop %v971
        %v973 = vmul.f32 1.0, %v972
        %v974 = vtanh.pop %v960
        %v975 = vxor.u32 %v961, 2147483648
        %v976 = vmul.f32 %v975, 1.442695
        %v977 = vpow.pop %v976
        %v978 = vadd.f32 %v977, 1.0
        %v979 = vrcp.pop %v978
        %v980 = vmul.f32 1.0, %v979
        %v981 = vmul.f32 %v973, %v674
        %v982 = vmul.f32 %v967, %v974
        %v983 = vadd.f32 %v981, %v982
        %v984 = vtanh.pop %v983
        %v985 = vmul.f32 %v980, %v984
        %s986 = scalar_lea.vmem %s243, 8 [#allocation9]
        %987 = vst [vmem:[%s986] sm:$0xff] %v985
        %s988 = scalar_lea.vmem [#allocation2], 64
        %v989 = vld [vmem:[%s988] sm:$0xff]
        %v990 = vld [vmem:[%s988 + $0x8] sm:$0xff]
        %v991 = vld [vmem:[%s988 + $0x10] sm:$0xff]
        %v992 = vld [vmem:[%s988 + $0x18] sm:$0xff]
        %v993 = vpack.c.bf16 %v985, %v985
        %v994 = vld [vmem:[#allocation8] sm:$0xff]
        %v995 = vld [vmem:[#allocation8 + $0x8] sm:$0xff]
        %v996 = vld [vmem:[#allocation8 + $0x10] sm:$0xff]
        %v997 = vld [vmem:[#allocation8 + $0x18] sm:$0xff]
        %v998 = vld [vmem:[#allocation8 + $0x20] sm:$0xff]
        %v999 = vld [vmem:[#allocation8 + $0x28] sm:$0xff]
        %v1000 = vld [vmem:[#allocation8 + $0x30] sm:$0xff]
        %v1001 = vld [vmem:[#allocation8 + $0x38] sm:$0xff]
        %v1002 = vld [vmem:[#allocation8 + $0x40] sm:$0xff]
        %v1003 = vld [vmem:[#allocation8 + $0x48] sm:$0xff]
        %v1004 = vld [vmem:[#allocation8 + $0x50] sm:$0xff]
        %v1005 = vld [vmem:[#allocation8 + $0x58] sm:$0xff]
        %v1006 = vld [vmem:[#allocation8 + $0x60] sm:$0xff]
        %v1007 = vld [vmem:[#allocation8 + $0x68] sm:$0xff]
        %v1008 = vld [vmem:[#allocation8 + $0x70] sm:$0xff]
        %v1009 = vld [vmem:[#allocation8 + $0x78] sm:$0xff]
        %v1010 = vld [vmem:[#allocation8 + $0x80] sm:$0xff]
        %v1011 = vld [vmem:[#allocation8 + $0x88] sm:$0xff]
        %v1012 = vld [vmem:[#allocation8 + $0x90] sm:$0xff]
        %v1013 = vld [vmem:[#allocation8 + $0x98] sm:$0xff]
        %v1014 = vld [vmem:[#allocation8 + $0xa0] sm:$0xff]
        %v1015 = vld [vmem:[#allocation8 + $0xa8] sm:$0xff]
        %v1016 = vld [vmem:[#allocation8 + $0xb0] sm:$0xff]
        %v1017 = vld [vmem:[#allocation8 + $0xb8] sm:$0xff]
        %v1018 = vld [vmem:[#allocation8 + $0xc0] sm:$0xff]
        %v1019 = vld [vmem:[#allocation8 + $0xc8] sm:$0xff]
        %v1020 = vld [vmem:[#allocation8 + $0xd0] sm:$0xff]
        %v1021 = vld [vmem:[#allocation8 + $0xd8] sm:$0xff]
        %v1022 = vld [vmem:[#allocation8 + $0xe0] sm:$0xff]
        %v1023 = vld [vmem:[#allocation8 + $0xe8] sm:$0xff]
        %v1024 = vld [vmem:[#allocation8 + $0xf0] sm:$0xff]
        %v1025 = vld [vmem:[#allocation8 + $0xf8] sm:$0xff]
        %v1058 = vunpack.c.l.b16 %v994
        %v1059 = vunpack.c.h.b16 %v994
        %v1060 = vunpack.c.l.b16 %v995
        %v1061 = vunpack.c.h.b16 %v995
        %v1062 = vunpack.c.l.b16 %v996
        %v1063 = vunpack.c.h.b16 %v996
        %v1064 = vunpack.c.l.b16 %v997
        %v1065 = vunpack.c.h.b16 %v997
        %v1066 = vunpack.c.l.b16 %v998
        %v1067 = vunpack.c.h.b16 %v998
        %v1068 = vunpack.c.l.b16 %v999
        %v1069 = vunpack.c.h.b16 %v999
        %v1070 = vunpack.c.l.b16 %v1000
        %v1071 = vunpack.c.h.b16 %v1000
        %v1072 = vunpack.c.l.b16 %v1001
        %v1073 = vunpack.c.h.b16 %v1001
        %v1074 = vunpack.c.l.b16 %v1002
        %v1075 = vunpack.c.h.b16 %v1002
        %v1076 = vunpack.c.l.b16 %v1003
        %v1077 = vunpack.c.h.b16 %v1003
        %v1078 = vunpack.c.l.b16 %v1004
        %v1079 = vunpack.c.h.b16 %v1004
        %v1080 = vunpack.c.l.b16 %v1005
        %v1081 = vunpack.c.h.b16 %v1005
        %v1082 = vunpack.c.l.b16 %v1006
        %v1083 = vunpack.c.h.b16 %v1006
        %v1084 = vunpack.c.l.b16 %v1007
        %v1085 = vunpack.c.h.b16 %v1007
        %v1086 = vunpack.c.l.b16 %v1008
        %v1087 = vunpack.c.h.b16 %v1008
        %v1088 = vunpack.c.l.b16 %v1009
        %v1089 = vunpack.c.h.b16 %v1009
        %v1090 = vunpack.c.l.b16 %v1010
        %v1091 = vunpack.c.h.b16 %v1010
        %v1092 = vunpack.c.l.b16 %v1011
        %v1093 = vunpack.c.h.b16 %v1011
        %v1094 = vunpack.c.l.b16 %v1012
        %v1095 = vunpack.c.h.b16 %v1012
        %v1096 = vunpack.c.l.b16 %v1013
        %v1097 = vunpack.c.h.b16 %v1013
        %v1098 = vunpack.c.l.b16 %v1014
        %v1099 = vunpack.c.h.b16 %v1014
        %v1100 = vunpack.c.l.b16 %v1015
        %v1101 = vunpack.c.h.b16 %v1015
        %v1102 = vunpack.c.l.b16 %v1016
        %v1103 = vunpack.c.h.b16 %v1016
        %v1104 = vunpack.c.l.b16 %v1017
        %v1105 = vunpack.c.h.b16 %v1017
        %v1106 = vunpack.c.l.b16 %v1018
        %v1107 = vunpack.c.h.b16 %v1018
        %v1108 = vunpack.c.l.b16 %v1019
        %v1109 = vunpack.c.h.b16 %v1019
        %v1110 = vunpack.c.l.b16 %v1020
        %v1111 = vunpack.c.h.b16 %v1020
        %v1112 = vunpack.c.l.b16 %v1021
        %v1113 = vunpack.c.h.b16 %v1021
        %v1114 = vunpack.c.l.b16 %v1022
        %v1115 = vunpack.c.h.b16 %v1022
        %v1116 = vunpack.c.l.b16 %v1023
        %v1117 = vunpack.c.h.b16 %v1023
        %v1118 = vunpack.c.l.b16 %v1024
        %v1119 = vunpack.c.h.b16 %v1024
        %v1120 = vunpack.c.l.b16 %v1025
        %v1121 = vunpack.c.h.b16 %v1025
        %v1122 = vpack.c.b16 %v1062, %v1058
        %v1123 = vpack.c.b16 %v1063, %v1059
        %v1124 = vpack.c.b16 %v1064, %v1060
        %v1125 = vpack.c.b16 %v1065, %v1061
        %v1126 = vpack.c.b16 %v1070, %v1066
        %v1127 = vpack.c.b16 %v1071, %v1067
        %v1128 = vpack.c.b16 %v1072, %v1068
        %v1129 = vpack.c.b16 %v1073, %v1069
        %v1130 = vpack.c.b16 %v1078, %v1074
        %v1131 = vpack.c.b16 %v1079, %v1075
        %v1132 = vpack.c.b16 %v1080, %v1076
        %v1133 = vpack.c.b16 %v1081, %v1077
        %v1134 = vpack.c.b16 %v1086, %v1082
        %v1135 = vpack.c.b16 %v1087, %v1083
        %v1136 = vpack.c.b16 %v1088, %v1084
        %v1137 = vpack.c.b16 %v1089, %v1085
        %v1138 = vpack.c.b16 %v1094, %v1090
        %v1139 = vpack.c.b16 %v1095, %v1091
        %v1140 = vpack.c.b16 %v1096, %v1092
        %v1141 = vpack.c.b16 %v1097, %v1093
        %v1142 = vpack.c.b16 %v1102, %v1098
        %v1143 = vpack.c.b16 %v1103, %v1099
        %v1144 = vpack.c.b16 %v1104, %v1100
        %v1145 = vpack.c.b16 %v1105, %v1101
        %v1146 = vpack.c.b16 %v1110, %v1106
        %v1147 = vpack.c.b16 %v1111, %v1107
        %v1148 = vpack.c.b16 %v1112, %v1108
        %v1149 = vpack.c.b16 %v1113, %v1109
        %v1150 = vpack.c.b16 %v1118, %v1114
        %v1151 = vpack.c.b16 %v1119, %v1115
        %v1152 = vpack.c.b16 %v1120, %v1116
        %v1153 = vpack.c.b16 %v1121, %v1117
        %1186 = vmatprep.subr.bf16.mxu0 %v1151
        %1187 = vmatpush1.bf16.msra.mxu0 %v1150
        %1188 = vmatprep.subr.bf16.mxu0 %v1147
        %1189 = vmatpush1.bf16.msra.mxu0 %v1146
        %1190 = vmatprep.subr.bf16.mxu0 %v1143
        %1191 = vmatpush1.bf16.msra.mxu0 %v1142
        %1192 = vmatprep.subr.bf16.mxu0 %v1139
        %1193 = vmatpush1.bf16.msra.mxu0 %v1138
        %1194 = vmatprep.subr.bf16.mxu0 %v1135
        %1195 = vmatpush1.bf16.msra.mxu0 %v1134
        %1196 = vmatprep.subr.bf16.mxu0 %v1131
        %1197 = vmatpush1.bf16.msra.mxu0 %v1130
        %1198 = vmatprep.subr.bf16.mxu0 %v1127
        %1199 = vmatpush1.bf16.msra.mxu0 %v1126
        %1200 = vmatprep.subr.bf16.mxu0 %v1123
        %1201 = vmatpush1.bf16.msra.mxu0 %v1122
        %1202 = vmatprep.subr.bf16.mxu0 0
        %1203 = vmatpush2.bf16.msra.mxu0 0
        %1204 = vmatprep.subr.bf16.mxu0 0
        %1205 = vmatpush2.bf16.msra.mxu0 0
        %1206 = vmatprep.subr.bf16.mxu0 0
        %1207 = vmatpush2.bf16.msra.mxu0 0
        %1208 = vmatprep.subr.bf16.mxu0 0
        %1209 = vmatpush2.bf16.msra.mxu0 0
        %1210 = vmatprep.subr.bf16.mxu0 0
        %1211 = vmatpush2.bf16.msra.mxu0 0
        %1212 = vmatprep.subr.bf16.mxu0 0
        %1213 = vmatpush2.bf16.msra.mxu0 0
        %1214 = vmatprep.subr.bf16.mxu0 0
        %1215 = vmatpush2.bf16.msra.mxu0 0
        %1216 = vmatprep.subr.bf16.mxu0 0
        %1217 = vmatpush2.bf16.msra.mxu0 0
        %1218 = vmatprep.mubr.bf16.mxu0 0
        %1219 = vmatmul.mubr.bf16.gmra.mxu0 %v993
        %v1220 = vpop.f32.mrf.mxu0
        %v1221 = vadd.f32 0.0, %v1220
        %v1222 = vpop.f32.mrf.mxu0
        %v1223 = vadd.f32 0.0, %v1222
        %v1224 = vpop.f32.mrf.mxu0
        %v1225 = vpop.f32.mrf.mxu0
        %1226 = vdwg.mxu0
        %1227 = vmatprep.subr.bf16.mxu0 %v1153
        %1228 = vmatpush1.bf16.msra.mxu0 %v1152
        %1229 = vmatprep.subr.bf16.mxu0 %v1149
        %1230 = vmatpush1.bf16.msra.mxu0 %v1148
        %1231 = vmatprep.subr.bf16.mxu0 %v1145
        %1232 = vmatpush1.bf16.msra.mxu0 %v1144
        %1233 = vmatprep.subr.bf16.mxu0 %v1141
        %1234 = vmatpush1.bf16.msra.mxu0 %v1140
        %1235 = vmatprep.subr.bf16.mxu0 %v1137
        %1236 = vmatpush1.bf16.msra.mxu0 %v1136
        %1237 = vmatprep.subr.bf16.mxu0 %v1133
        %1238 = vmatpush1.bf16.msra.mxu0 %v1132
        %1239 = vmatprep.subr.bf16.mxu0 %v1129
        %1240 = vmatpush1.bf16.msra.mxu0 %v1128
        %1241 = vmatprep.subr.bf16.mxu0 %v1125
        %1242 = vmatpush1.bf16.msra.mxu0 %v1124
        %1243 = vmatprep.subr.bf16.mxu0 0
        %1244 = vmatpush2.bf16.msra.mxu0 0
        %1245 = vmatprep.subr.bf16.mxu0 0
        %1246 = vmatpush2.bf16.msra.mxu0 0
        %1247 = vmatprep.subr.bf16.mxu0 0
        %1248 = vmatpush2.bf16.msra.mxu0 0
        %1249 = vmatprep.subr.bf16.mxu0 0
        %1250 = vmatpush2.bf16.msra.mxu0 0
        %1251 = vmatprep.subr.bf16.mxu0 0
        %1252 = vmatpush2.bf16.msra.mxu0 0
        %1253 = vmatprep.subr.bf16.mxu0 0
        %1254 = vmatpush2.bf16.msra.mxu0 0
        %1255 = vmatprep.subr.bf16.mxu0 0
        %1256 = vmatpush2.bf16.msra.mxu0 0
        %1257 = vmatprep.subr.bf16.mxu0 0
        %1258 = vmatpush2.bf16.msra.mxu0 0
        %1259 = vmatprep.mubr.bf16.mxu0 0
        %1260 = vmatmul.mubr.bf16.gmra.mxu0 %v993
        %v1261 = vpop.f32.mrf.mxu0
        %v1262 = vadd.f32 0.0, %v1261
        %v1263 = vpop.f32.mrf.mxu0
        %v1264 = vadd.f32 0.0, %v1263
        %v1265 = vpop.f32.mrf.mxu0
        %v1266 = vpop.f32.mrf.mxu0
        %1267 = vdwg.mxu0
        %v1268 = vadd.f32 %v989, %v1221
        %v1269 = vadd.f32 %v990, %v1223
        %v1270 = vadd.f32 %v991, %v1262
        %v1271 = vadd.f32 %v992, %v1264
        %v1272 = vxor.u32 %v1268, 2147483648
        %v1273 = vmul.f32 %v1272, 1.442695
        %v1274 = vpow.pop %v1273
        %v1275 = vadd.f32 %v1274, 1.0
        %v1276 = vrcp.pop %v1275
        %v1277 = vmul.f32 1.0, %v1276
        %v1278 = vxor.u32 %v1269, 2147483648
        %v1279 = vmul.f32 %v1278, 1.442695
        %v1280 = vpow.pop %v1279
        %v1281 = vadd.f32 %v1280, 1.0
        %v1282 = vrcp.pop %v1281
        %v1283 = vmul.f32 1.0, %v1282
        %v1284 = vtanh.pop %v1270
        %v1285 = vxor.u32 %v1271, 2147483648
        %v1286 = vmul.f32 %v1285, 1.442695
        %v1287 = vpow.pop %v1286
        %v1288 = vadd.f32 %v1287, 1.0
        %v1289 = vrcp.pop %v1288
        %v1290 = vmul.f32 1.0, %v1289
        %v1291 = vmul.f32 %v1283, %v983
        %v1292 = vmul.f32 %v1277, %v1284
        %v1293 = vadd.f32 %v1291, %v1292
        %v1294 = vtanh.pop %v1293
        %v1295 = vmul.f32 %v1290, %v1294
        %s1296 = scalar_lea.vmem %s243, 16 [#allocation9]
        %1297 = vst [vmem:[%s1296] sm:$0xff] %v1295
        %s1298 = scalar_lea.vmem [#allocation2], 96
        %v1299 = vld [vmem:[%s1298] sm:$0xff]
        %v1300 = vld [vmem:[%s1298 + $0x8] sm:$0xff]
        %v1301 = vld [vmem:[%s1298 + $0x10] sm:$0xff]
        %v1302 = vld [vmem:[%s1298 + $0x18] sm:$0xff]
        %v1303 = vpack.c.bf16 %v1295, %v1295
        %v1304 = vld [vmem:[#allocation8] sm:$0xff]
        %v1305 = vld [vmem:[#allocation8 + $0x8] sm:$0xff]
        %v1306 = vld [vmem:[#allocation8 + $0x10] sm:$0xff]
        %v1307 = vld [vmem:[#allocation8 + $0x18] sm:$0xff]
        %v1308 = vld [vmem:[#allocation8 + $0x20] sm:$0xff]
        %v1309 = vld [vmem:[#allocation8 + $0x28] sm:$0xff]
        %v1310 = vld [vmem:[#allocation8 + $0x30] sm:$0xff]
        %v1311 = vld [vmem:[#allocation8 + $0x38] sm:$0xff]
        %v1312 = vld [vmem:[#allocation8 + $0x40] sm:$0xff]
        %v1313 = vld [vmem:[#allocation8 + $0x48] sm:$0xff]
        %v1314 = vld [vmem:[#allocation8 + $0x50] sm:$0xff]
        %v1315 = vld [vmem:[#allocation8 + $0x58] sm:$0xff]
        %v1316 = vld [vmem:[#allocation8 + $0x60] sm:$0xff]
        %v1317 = vld [vmem:[#allocation8 + $0x68] sm:$0xff]
        %v1318 = vld [vmem:[#allocation8 + $0x70] sm:$0xff]
        %v1319 = vld [vmem:[#allocation8 + $0x78] sm:$0xff]
        %v1320 = vld [vmem:[#allocation8 + $0x80] sm:$0xff]
        %v1321 = vld [vmem:[#allocation8 + $0x88] sm:$0xff]
        %v1322 = vld [vmem:[#allocation8 + $0x90] sm:$0xff]
        %v1323 = vld [vmem:[#allocation8 + $0x98] sm:$0xff]
        %v1324 = vld [vmem:[#allocation8 + $0xa0] sm:$0xff]
        %v1325 = vld [vmem:[#allocation8 + $0xa8] sm:$0xff]
        %v1326 = vld [vmem:[#allocation8 + $0xb0] sm:$0xff]
        %v1327 = vld [vmem:[#allocation8 + $0xb8] sm:$0xff]
        %v1328 = vld [vmem:[#allocation8 + $0xc0] sm:$0xff]
        %v1329 = vld [vmem:[#allocation8 + $0xc8] sm:$0xff]
        %v1330 = vld [vmem:[#allocation8 + $0xd0] sm:$0xff]
        %v1331 = vld [vmem:[#allocation8 + $0xd8] sm:$0xff]
        %v1332 = vld [vmem:[#allocation8 + $0xe0] sm:$0xff]
        %v1333 = vld [vmem:[#allocation8 + $0xe8] sm:$0xff]
        %v1334 = vld [vmem:[#allocation8 + $0xf0] sm:$0xff]
        %v1335 = vld [vmem:[#allocation8 + $0xf8] sm:$0xff]
        %v1368 = vunpack.c.l.b16 %v1304
        %v1369 = vunpack.c.h.b16 %v1304
        %v1370 = vunpack.c.l.b16 %v1305
        %v1371 = vunpack.c.h.b16 %v1305
        %v1372 = vunpack.c.l.b16 %v1306
        %v1373 = vunpack.c.h.b16 %v1306
        %v1374 = vunpack.c.l.b16 %v1307
        %v1375 = vunpack.c.h.b16 %v1307
        %v1376 = vunpack.c.l.b16 %v1308
        %v1377 = vunpack.c.h.b16 %v1308
        %v1378 = vunpack.c.l.b16 %v1309
        %v1379 = vunpack.c.h.b16 %v1309
        %v1380 = vunpack.c.l.b16 %v1310
        %v1381 = vunpack.c.h.b16 %v1310
        %v1382 = vunpack.c.l.b16 %v1311
        %v1383 = vunpack.c.h.b16 %v1311
        %v1384 = vunpack.c.l.b16 %v1312
        %v1385 = vunpack.c.h.b16 %v1312
        %v1386 = vunpack.c.l.b16 %v1313
        %v1387 = vunpack.c.h.b16 %v1313
        %v1388 = vunpack.c.l.b16 %v1314
        %v1389 = vunpack.c.h.b16 %v1314
        %v1390 = vunpack.c.l.b16 %v1315
        %v1391 = vunpack.c.h.b16 %v1315
        %v1392 = vunpack.c.l.b16 %v1316
        %v1393 = vunpack.c.h.b16 %v1316
        %v1394 = vunpack.c.l.b16 %v1317
        %v1395 = vunpack.c.h.b16 %v1317
        %v1396 = vunpack.c.l.b16 %v1318
        %v1397 = vunpack.c.h.b16 %v1318
        %v1398 = vunpack.c.l.b16 %v1319
        %v1399 = vunpack.c.h.b16 %v1319
        %v1400 = vunpack.c.l.b16 %v1320
        %v1401 = vunpack.c.h.b16 %v1320
        %v1402 = vunpack.c.l.b16 %v1321
        %v1403 = vunpack.c.h.b16 %v1321
        %v1404 = vunpack.c.l.b16 %v1322
        %v1405 = vunpack.c.h.b16 %v1322
        %v1406 = vunpack.c.l.b16 %v1323
        %v1407 = vunpack.c.h.b16 %v1323
        %v1408 = vunpack.c.l.b16 %v1324
        %v1409 = vunpack.c.h.b16 %v1324
        %v1410 = vunpack.c.l.b16 %v1325
        %v1411 = vunpack.c.h.b16 %v1325
        %v1412 = vunpack.c.l.b16 %v1326
        %v1413 = vunpack.c.h.b16 %v1326
        %v1414 = vunpack.c.l.b16 %v1327
        %v1415 = vunpack.c.h.b16 %v1327
        %v1416 = vunpack.c.l.b16 %v1328
        %v1417 = vunpack.c.h.b16 %v1328
        %v1418 = vunpack.c.l.b16 %v1329
        %v1419 = vunpack.c.h.b16 %v1329
        %v1420 = vunpack.c.l.b16 %v1330
        %v1421 = vunpack.c.h.b16 %v1330
        %v1422 = vunpack.c.l.b16 %v1331
        %v1423 = vunpack.c.h.b16 %v1331
        %v1424 = vunpack.c.l.b16 %v1332
        %v1425 = vunpack.c.h.b16 %v1332
        %v1426 = vunpack.c.l.b16 %v1333
        %v1427 = vunpack.c.h.b16 %v1333
        %v1428 = vunpack.c.l.b16 %v1334
        %v1429 = vunpack.c.h.b16 %v1334
        %v1430 = vunpack.c.l.b16 %v1335
        %v1431 = vunpack.c.h.b16 %v1335
        %v1432 = vpack.c.b16 %v1372, %v1368
        %v1433 = vpack.c.b16 %v1373, %v1369
        %v1434 = vpack.c.b16 %v1374, %v1370
        %v1435 = vpack.c.b16 %v1375, %v1371
        %v1436 = vpack.c.b16 %v1380, %v1376
        %v1437 = vpack.c.b16 %v1381, %v1377
        %v1438 = vpack.c.b16 %v1382, %v1378
        %v1439 = vpack.c.b16 %v1383, %v1379
        %v1440 = vpack.c.b16 %v1388, %v1384
        %v1441 = vpack.c.b16 %v1389, %v1385
        %v1442 = vpack.c.b16 %v1390, %v1386
        %v1443 = vpack.c.b16 %v1391, %v1387
        %v1444 = vpack.c.b16 %v1396, %v1392
        %v1445 = vpack.c.b16 %v1397, %v1393
        %v1446 = vpack.c.b16 %v1398, %v1394
        %v1447 = vpack.c.b16 %v1399, %v1395
        %v1448 = vpack.c.b16 %v1404, %v1400
        %v1449 = vpack.c.b16 %v1405, %v1401
        %v1450 = vpack.c.b16 %v1406, %v1402
        %v1451 = vpack.c.b16 %v1407, %v1403
        %v1452 = vpack.c.b16 %v1412, %v1408
        %v1453 = vpack.c.b16 %v1413, %v1409
        %v1454 = vpack.c.b16 %v1414, %v1410
        %v1455 = vpack.c.b16 %v1415, %v1411
        %v1456 = vpack.c.b16 %v1420, %v1416
        %v1457 = vpack.c.b16 %v1421, %v1417
        %v1458 = vpack.c.b16 %v1422, %v1418
        %v1459 = vpack.c.b16 %v1423, %v1419
        %v1460 = vpack.c.b16 %v1428, %v1424
        %v1461 = vpack.c.b16 %v1429, %v1425
        %v1462 = vpack.c.b16 %v1430, %v1426
        %v1463 = vpack.c.b16 %v1431, %v1427
        %1496 = vmatprep.subr.bf16.mxu0 %v1461
        %1497 = vmatpush1.bf16.msra.mxu0 %v1460
        %1498 = vmatprep.subr.bf16.mxu0 %v1457
        %1499 = vmatpush1.bf16.msra.mxu0 %v1456
        %1500 = vmatprep.subr.bf16.mxu0 %v1453
        %1501 = vmatpush1.bf16.msra.mxu0 %v1452
        %1502 = vmatprep.subr.bf16.mxu0 %v1449
        %1503 = vmatpush1.bf16.msra.mxu0 %v1448
        %1504 = vmatprep.subr.bf16.mxu0 %v1445
        %1505 = vmatpush1.bf16.msra.mxu0 %v1444
        %1506 = vmatprep.subr.bf16.mxu0 %v1441
        %1507 = vmatpush1.bf16.msra.mxu0 %v1440
        %1508 = vmatprep.subr.bf16.mxu0 %v1437
        %1509 = vmatpush1.bf16.msra.mxu0 %v1436
        %1510 = vmatprep.subr.bf16.mxu0 %v1433
        %1511 = vmatpush1.bf16.msra.mxu0 %v1432
        %1512 = vmatprep.subr.bf16.mxu0 0
        %1513 = vmatpush2.bf16.msra.mxu0 0
        %1514 = vmatprep.subr.bf16.mxu0 0
        %1515 = vmatpush2.bf16.msra.mxu0 0
        %1516 = vmatprep.subr.bf16.mxu0 0
        %1517 = vmatpush2.bf16.msra.mxu0 0
        %1518 = vmatprep.subr.bf16.mxu0 0
        %1519 = vmatpush2.bf16.msra.mxu0 0
        %1520 = vmatprep.subr.bf16.mxu0 0
        %1521 = vmatpush2.bf16.msra.mxu0 0
        %1522 = vmatprep.subr.bf16.mxu0 0
        %1523 = vmatpush2.bf16.msra.mxu0 0
        %1524 = vmatprep.subr.bf16.mxu0 0
        %1525 = vmatpush2.bf16.msra.mxu0 0
        %1526 = vmatprep.subr.bf16.mxu0 0
        %1527 = vmatpush2.bf16.msra.mxu0 0
        %1528 = vmatprep.mubr.bf16.mxu0 0
        %1529 = vmatmul.mubr.bf16.gmra.mxu0 %v1303
        %v1530 = vpop.f32.mrf.mxu0
        %v1531 = vadd.f32 0.0, %v1530
        %v1532 = vpop.f32.mrf.mxu0
        %v1533 = vadd.f32 0.0, %v1532
        %v1534 = vpop.f32.mrf.mxu0
        %v1535 = vpop.f32.mrf.mxu0
        %1536 = vdwg.mxu0
        %1537 = vmatprep.subr.bf16.mxu0 %v1463
        %1538 = vmatpush1.bf16.msra.mxu0 %v1462
        %1539 = vmatprep.subr.bf16.mxu0 %v1459
        %1540 = vmatpush1.bf16.msra.mxu0 %v1458
        %1541 = vmatprep.subr.bf16.mxu0 %v1455
        %1542 = vmatpush1.bf16.msra.mxu0 %v1454
        %1543 = vmatprep.subr.bf16.mxu0 %v1451
        %1544 = vmatpush1.bf16.msra.mxu0 %v1450
        %1545 = vmatprep.subr.bf16.mxu0 %v1447
        %1546 = vmatpush1.bf16.msra.mxu0 %v1446
        %1547 = vmatprep.subr.bf16.mxu0 %v1443
        %1548 = vmatpush1.bf16.msra.mxu0 %v1442
        %1549 = vmatprep.subr.bf16.mxu0 %v1439
        %1550 = vmatpush1.bf16.msra.mxu0 %v1438
        %1551 = vmatprep.subr.bf16.mxu0 %v1435
        %1552 = vmatpush1.bf16.msra.mxu0 %v1434
        %1553 = vmatprep.subr.bf16.mxu0 0
        %1554 = vmatpush2.bf16.msra.mxu0 0
        %1555 = vmatprep.subr.bf16.mxu0 0
        %1556 = vmatpush2.bf16.msra.mxu0 0
        %1557 = vmatprep.subr.bf16.mxu0 0
        %1558 = vmatpush2.bf16.msra.mxu0 0
        %1559 = vmatprep.subr.bf16.mxu0 0
        %1560 = vmatpush2.bf16.msra.mxu0 0
        %1561 = vmatprep.subr.bf16.mxu0 0
        %1562 = vmatpush2.bf16.msra.mxu0 0
        %1563 = vmatprep.subr.bf16.mxu0 0
        %1564 = vmatpush2.bf16.msra.mxu0 0
        %1565 = vmatprep.subr.bf16.mxu0 0
        %1566 = vmatpush2.bf16.msra.mxu0 0
        %1567 = vmatprep.subr.bf16.mxu0 0
        %1568 = vmatpush2.bf16.msra.mxu0 0
        %1569 = vmatprep.mubr.bf16.mxu0 0
        %1570 = vmatmul.mubr.bf16.gmra.mxu0 %v1303
        %v1571 = vpop.f32.mrf.mxu0
        %v1572 = vadd.f32 0.0, %v1571
        %v1573 = vpop.f32.mrf.mxu0
        %v1574 = vadd.f32 0.0, %v1573
        %v1575 = vpop.f32.mrf.mxu0
        %v1576 = vpop.f32.mrf.mxu0
        %1577 = vdwg.mxu0
        %v1578 = vadd.f32 %v1299, %v1531
        %v1579 = vadd.f32 %v1300, %v1533
        %v1580 = vadd.f32 %v1301, %v1572
        %v1581 = vadd.f32 %v1302, %v1574
        %v1582 = vxor.u32 %v1578, 2147483648
        %v1583 = vmul.f32 %v1582, 1.442695
        %v1584 = vpow.pop %v1583
        %v1585 = vadd.f32 %v1584, 1.0
        %v1586 = vrcp.pop %v1585
        %v1587 = vmul.f32 1.0, %v1586
        %v1588 = vxor.u32 %v1579, 2147483648
        %v1589 = vmul.f32 %v1588, 1.442695
        %v1590 = vpow.pop %v1589
        %v1591 = vadd.f32 %v1590, 1.0
        %v1592 = vrcp.pop %v1591
        %v1593 = vmul.f32 1.0, %v1592
        %v1594 = vtanh.pop %v1580
        %v1595 = vxor.u32 %v1581, 2147483648
        %v1596 = vmul.f32 %v1595, 1.442695
        %v1597 = vpow.pop %v1596
        %v1598 = vadd.f32 %v1597, 1.0
        %v1599 = vrcp.pop %v1598
        %v1600 = vmul.f32 1.0, %v1599
        %v1601 = vmul.f32 %v1593, %v1293
        %v1602 = vmul.f32 %v1587, %v1594
        %v1603 = vadd.f32 %v1601, %v1602
        %v1604 = vtanh.pop %v1603
        %v1605 = vmul.f32 %v1600, %v1604
        %s1606 = scalar_lea.vmem %s243, 24 [#allocation9]
        %1607 = vst [vmem:[%s1606] sm:$0xff] %v1605
        %s1608 = scalar_lea.vmem [#allocation2], 128
        %v1609 = vld [vmem:[%s1608] sm:$0xff]
        %v1610 = vld [vmem:[%s1608 + $0x8] sm:$0xff]
        %v1611 = vld [vmem:[%s1608 + $0x10] sm:$0xff]
        %v1612 = vld [vmem:[%s1608 + $0x18] sm:$0xff]
        %v1613 = vpack.c.bf16 %v1605, %v1605
        %v1614 = vld [vmem:[#allocation8] sm:$0xff]
        %v1615 = vld [vmem:[#allocation8 + $0x8] sm:$0xff]
        %v1616 = vld [vmem:[#allocation8 + $0x10] sm:$0xff]
        %v1617 = vld [vmem:[#allocation8 + $0x18] sm:$0xff]
        %v1618 = vld [vmem:[#allocation8 + $0x20] sm:$0xff]
        %v1619 = vld [vmem:[#allocation8 + $0x28] sm:$0xff]
        %v1620 = vld [vmem:[#allocation8 + $0x30] sm:$0xff]
        %v1621 = vld [vmem:[#allocation8 + $0x38] sm:$0xff]
        %v1622 = vld [vmem:[#allocation8 + $0x40] sm:$0xff]
        %v1623 = vld [vmem:[#allocation8 + $0x48] sm:$0xff]
        %v1624 = vld [vmem:[#allocation8 + $0x50] sm:$0xff]
        %v1625 = vld [vmem:[#allocation8 + $0x58] sm:$0xff]
        %v1626 = vld [vmem:[#allocation8 + $0x60] sm:$0xff]
        %v1627 = vld [vmem:[#allocation8 + $0x68] sm:$0xff]
        %v1628 = vld [vmem:[#allocation8 + $0x70] sm:$0xff]
        %v1629 = vld [vmem:[#allocation8 + $0x78] sm:$0xff]
        %v1630 = vld [vmem:[#allocation8 + $0x80] sm:$0xff]
        %v1631 = vld [vmem:[#allocation8 + $0x88] sm:$0xff]
        %v1632 = vld [vmem:[#allocation8 + $0x90] sm:$0xff]
        %v1633 = vld [vmem:[#allocation8 + $0x98] sm:$0xff]
        %v1634 = vld [vmem:[#allocation8 + $0xa0] sm:$0xff]
        %v1635 = vld [vmem:[#allocation8 + $0xa8] sm:$0xff]
        %v1636 = vld [vmem:[#allocation8 + $0xb0] sm:$0xff]
        %v1637 = vld [vmem:[#allocation8 + $0xb8] sm:$0xff]
        %v1638 = vld [vmem:[#allocation8 + $0xc0] sm:$0xff]
        %v1639 = vld [vmem:[#allocation8 + $0xc8] sm:$0xff]
        %v1640 = vld [vmem:[#allocation8 + $0xd0] sm:$0xff]
        %v1641 = vld [vmem:[#allocation8 + $0xd8] sm:$0xff]
        %v1642 = vld [vmem:[#allocation8 + $0xe0] sm:$0xff]
        %v1643 = vld [vmem:[#allocation8 + $0xe8] sm:$0xff]
        %v1644 = vld [vmem:[#allocation8 + $0xf0] sm:$0xff]
        %v1645 = vld [vmem:[#allocation8 + $0xf8] sm:$0xff]
        %v1678 = vunpack.c.l.b16 %v1614
        %v1679 = vunpack.c.h.b16 %v1614
        %v1680 = vunpack.c.l.b16 %v1615
        %v1681 = vunpack.c.h.b16 %v1615
        %v1682 = vunpack.c.l.b16 %v1616
        %v1683 = vunpack.c.h.b16 %v1616
        %v1684 = vunpack.c.l.b16 %v1617
        %v1685 = vunpack.c.h.b16 %v1617
        %v1686 = vunpack.c.l.b16 %v1618
        %v1687 = vunpack.c.h.b16 %v1618
        %v1688 = vunpack.c.l.b16 %v1619
        %v1689 = vunpack.c.h.b16 %v1619
        %v1690 = vunpack.c.l.b16 %v1620
        %v1691 = vunpack.c.h.b16 %v1620
        %v1692 = vunpack.c.l.b16 %v1621
        %v1693 = vunpack.c.h.b16 %v1621
        %v1694 = vunpack.c.l.b16 %v1622
        %v1695 = vunpack.c.h.b16 %v1622
        %v1696 = vunpack.c.l.b16 %v1623
        %v1697 = vunpack.c.h.b16 %v1623
        %v1698 = vunpack.c.l.b16 %v1624
        %v1699 = vunpack.c.h.b16 %v1624
        %v1700 = vunpack.c.l.b16 %v1625
        %v1701 = vunpack.c.h.b16 %v1625
        %v1702 = vunpack.c.l.b16 %v1626
        %v1703 = vunpack.c.h.b16 %v1626
        %v1704 = vunpack.c.l.b16 %v1627
        %v1705 = vunpack.c.h.b16 %v1627
        %v1706 = vunpack.c.l.b16 %v1628
        %v1707 = vunpack.c.h.b16 %v1628
        %v1708 = vunpack.c.l.b16 %v1629
        %v1709 = vunpack.c.h.b16 %v1629
        %v1710 = vunpack.c.l.b16 %v1630
        %v1711 = vunpack.c.h.b16 %v1630
        %v1712 = vunpack.c.l.b16 %v1631
        %v1713 = vunpack.c.h.b16 %v1631
        %v1714 = vunpack.c.l.b16 %v1632
        %v1715 = vunpack.c.h.b16 %v1632
        %v1716 = vunpack.c.l.b16 %v1633
        %v1717 = vunpack.c.h.b16 %v1633
        %v1718 = vunpack.c.l.b16 %v1634
        %v1719 = vunpack.c.h.b16 %v1634
        %v1720 = vunpack.c.l.b16 %v1635
        %v1721 = vunpack.c.h.b16 %v1635
        %v1722 = vunpack.c.l.b16 %v1636
        %v1723 = vunpack.c.h.b16 %v1636
        %v1724 = vunpack.c.l.b16 %v1637
        %v1725 = vunpack.c.h.b16 %v1637
        %v1726 = vunpack.c.l.b16 %v1638
        %v1727 = vunpack.c.h.b16 %v1638
        %v1728 = vunpack.c.l.b16 %v1639
        %v1729 = vunpack.c.h.b16 %v1639
        %v1730 = vunpack.c.l.b16 %v1640
        %v1731 = vunpack.c.h.b16 %v1640
        %v1732 = vunpack.c.l.b16 %v1641
        %v1733 = vunpack.c.h.b16 %v1641
        %v1734 = vunpack.c.l.b16 %v1642
        %v1735 = vunpack.c.h.b16 %v1642
        %v1736 = vunpack.c.l.b16 %v1643
        %v1737 = vunpack.c.h.b16 %v1643
        %v1738 = vunpack.c.l.b16 %v1644
        %v1739 = vunpack.c.h.b16 %v1644
        %v1740 = vunpack.c.l.b16 %v1645
        %v1741 = vunpack.c.h.b16 %v1645
        %v1742 = vpack.c.b16 %v1682, %v1678
        %v1743 = vpack.c.b16 %v1683, %v1679
        %v1744 = vpack.c.b16 %v1684, %v1680
        %v1745 = vpack.c.b16 %v1685, %v1681
        %v1746 = vpack.c.b16 %v1690, %v1686
        %v1747 = vpack.c.b16 %v1691, %v1687
        %v1748 = vpack.c.b16 %v1692, %v1688
        %v1749 = vpack.c.b16 %v1693, %v1689
        %v1750 = vpack.c.b16 %v1698, %v1694
        %v1751 = vpack.c.b16 %v1699, %v1695
        %v1752 = vpack.c.b16 %v1700, %v1696
        %v1753 = vpack.c.b16 %v1701, %v1697
        %v1754 = vpack.c.b16 %v1706, %v1702
        %v1755 = vpack.c.b16 %v1707, %v1703
        %v1756 = vpack.c.b16 %v1708, %v1704
        %v1757 = vpack.c.b16 %v1709, %v1705
        %v1758 = vpack.c.b16 %v1714, %v1710
        %v1759 = vpack.c.b16 %v1715, %v1711
        %v1760 = vpack.c.b16 %v1716, %v1712
        %v1761 = vpack.c.b16 %v1717, %v1713
        %v1762 = vpack.c.b16 %v1722, %v1718
        %v1763 = vpack.c.b16 %v1723, %v1719
        %v1764 = vpack.c.b16 %v1724, %v1720
        %v1765 = vpack.c.b16 %v1725, %v1721
        %v1766 = vpack.c.b16 %v1730, %v1726
        %v1767 = vpack.c.b16 %v1731, %v1727
        %v1768 = vpack.c.b16 %v1732, %v1728
        %v1769 = vpack.c.b16 %v1733, %v1729
        %v1770 = vpack.c.b16 %v1738, %v1734
        %v1771 = vpack.c.b16 %v1739, %v1735
        %v1772 = vpack.c.b16 %v1740, %v1736
        %v1773 = vpack.c.b16 %v1741, %v1737
        %1806 = vmatprep.subr.bf16.mxu0 %v1771
        %1807 = vmatpush1.bf16.msra.mxu0 %v1770
        %1808 = vmatprep.subr.bf16.mxu0 %v1767
        %1809 = vmatpush1.bf16.msra.mxu0 %v1766
        %1810 = vmatprep.subr.bf16.mxu0 %v1763
        %1811 = vmatpush1.bf16.msra.mxu0 %v1762
        %1812 = vmatprep.subr.bf16.mxu0 %v1759
        %1813 = vmatpush1.bf16.msra.mxu0 %v1758
        %1814 = vmatprep.subr.bf16.mxu0 %v1755
        %1815 = vmatpush1.bf16.msra.mxu0 %v1754
        %1816 = vmatprep.subr.bf16.mxu0 %v1751
        %1817 = vmatpush1.bf16.msra.mxu0 %v1750
        %1818 = vmatprep.subr.bf16.mxu0 %v1747
        %1819 = vmatpush1.bf16.msra.mxu0 %v1746
        %1820 = vmatprep.subr.bf16.mxu0 %v1743
        %1821 = vmatpush1.bf16.msra.mxu0 %v1742
        %1822 = vmatprep.subr.bf16.mxu0 0
        %1823 = vmatpush2.bf16.msra.mxu0 0
        %1824 = vmatprep.subr.bf16.mxu0 0
        %1825 = vmatpush2.bf16.msra.mxu0 0
        %1826 = vmatprep.subr.bf16.mxu0 0
        %1827 = vmatpush2.bf16.msra.mxu0 0
        %1828 = vmatprep.subr.bf16.mxu0 0
        %1829 = vmatpush2.bf16.msra.mxu0 0
        %1830 = vmatprep.subr.bf16.mxu0 0
        %1831 = vmatpush2.bf16.msra.mxu0 0
        %1832 = vmatprep.subr.bf16.mxu0 0
        %1833 = vmatpush2.bf16.msra.mxu0 0
        %1834 = vmatprep.subr.bf16.mxu0 0
        %1835 = vmatpush2.bf16.msra.mxu0 0
        %1836 = vmatprep.subr.bf16.mxu0 0
        %1837 = vmatpush2.bf16.msra.mxu0 0
        %1838 = vmatprep.mubr.bf16.mxu0 0
        %1839 = vmatmul.mubr.bf16.gmra.mxu0 %v1613
        %v1840 = vpop.f32.mrf.mxu0
        %v1841 = vadd.f32 0.0, %v1840
        %v1842 = vpop.f32.mrf.mxu0
        %v1843 = vadd.f32 0.0, %v1842
        %v1844 = vpop.f32.mrf.mxu0
        %v1845 = vpop.f32.mrf.mxu0
        %1846 = vdwg.mxu0
        %1847 = vmatprep.subr.bf16.mxu0 %v1773
        %1848 = vmatpush1.bf16.msra.mxu0 %v1772
        %1849 = vmatprep.subr.bf16.mxu0 %v1769
        %1850 = vmatpush1.bf16.msra.mxu0 %v1768
        %1851 = vmatprep.subr.bf16.mxu0 %v1765
        %1852 = vmatpush1.bf16.msra.mxu0 %v1764
        %1853 = vmatprep.subr.bf16.mxu0 %v1761
        %1854 = vmatpush1.bf16.msra.mxu0 %v1760
        %1855 = vmatprep.subr.bf16.mxu0 %v1757
        %1856 = vmatpush1.bf16.msra.mxu0 %v1756
        %1857 = vmatprep.subr.bf16.mxu0 %v1753
        %1858 = vmatpush1.bf16.msra.mxu0 %v1752
        %1859 = vmatprep.subr.bf16.mxu0 %v1749
        %1860 = vmatpush1.bf16.msra.mxu0 %v1748
        %1861 = vmatprep.subr.bf16.mxu0 %v1745
        %1862 = vmatpush1.bf16.msra.mxu0 %v1744
        %1863 = vmatprep.subr.bf16.mxu0 0
        %1864 = vmatpush2.bf16.msra.mxu0 0
        %1865 = vmatprep.subr.bf16.mxu0 0
        %1866 = vmatpush2.bf16.msra.mxu0 0
        %1867 = vmatprep.subr.bf16.mxu0 0
        %1868 = vmatpush2.bf16.msra.mxu0 0
        %1869 = vmatprep.subr.bf16.mxu0 0
        %1870 = vmatpush2.bf16.msra.mxu0 0
        %1871 = vmatprep.subr.bf16.mxu0 0
        %1872 = vmatpush2.bf16.msra.mxu0 0
        %1873 = vmatprep.subr.bf16.mxu0 0
        %1874 = vmatpush2.bf16.msra.mxu0 0
        %1875 = vmatprep.subr.bf16.mxu0 0
        %1876 = vmatpush2.bf16.msra.mxu0 0
        %1877 = vmatprep.subr.bf16.mxu0 0
        %1878 = vmatpush2.bf16.msra.mxu0 0
        %1879 = vmatprep.mubr.bf16.mxu0 0
        %1880 = vmatmul.mubr.bf16.gmra.mxu0 %v1613
        %v1881 = vpop.f32.mrf.mxu0
        %v1882 = vadd.f32 0.0, %v1881
        %v1883 = vpop.f32.mrf.mxu0
        %v1884 = vadd.f32 0.0, %v1883
        %v1885 = vpop.f32.mrf.mxu0
        %v1886 = vpop.f32.mrf.mxu0
        %1887 = vdwg.mxu0
        %v1888 = vadd.f32 %v1609, %v1841
        %v1889 = vadd.f32 %v1610, %v1843
        %v1890 = vadd.f32 %v1611, %v1882
        %v1891 = vadd.f32 %v1612, %v1884
        %v1892 = vxor.u32 %v1888, 2147483648
        %v1893 = vmul.f32 %v1892, 1.442695
        %v1894 = vpow.pop %v1893
        %v1895 = vadd.f32 %v1894, 1.0
        %v1896 = vrcp.pop %v1895
        %v1897 = vmul.f32 1.0, %v1896
        %v1898 = vxor.u32 %v1889, 2147483648
        %v1899 = vmul.f32 %v1898, 1.442695
        %v1900 = vpow.pop %v1899
        %v1901 = vadd.f32 %v1900, 1.0
        %v1902 = vrcp.pop %v1901
        %v1903 = vmul.f32 1.0, %v1902
        %v1904 = vtanh.pop %v1890
        %v1905 = vxor.u32 %v1891, 2147483648
        %v1906 = vmul.f32 %v1905, 1.442695
        %v1907 = vpow.pop %v1906
        %v1908 = vadd.f32 %v1907, 1.0
        %v1909 = vrcp.pop %v1908
        %v1910 = vmul.f32 1.0, %v1909
        %v1911 = vmul.f32 %v1903, %v1603
        %v1912 = vmul.f32 %v1897, %v1904
        %v1913 = vadd.f32 %v1911, %v1912
        %v1914 = vtanh.pop %v1913
        %v1915 = vmul.f32 %v1910, %v1914
        %s1916 = scalar_lea.vmem %s243, 32 [#allocation9]
        %1917 = vst [vmem:[%s1916] sm:$0xff] %v1915
        %s1918 = scalar_lea.vmem [#allocation2], 160
        %v1919 = vld [vmem:[%s1918] sm:$0xff]
        %v1920 = vld [vmem:[%s1918 + $0x8] sm:$0xff]
        %v1921 = vld [vmem:[%s1918 + $0x10] sm:$0xff]
        %v1922 = vld [vmem:[%s1918 + $0x18] sm:$0xff]
        %v1923 = vpack.c.bf16 %v1915, %v1915
        %v1924 = vld [vmem:[#allocation8] sm:$0xff]
        %v1925 = vld [vmem:[#allocation8 + $0x8] sm:$0xff]
        %v1926 = vld [vmem:[#allocation8 + $0x10] sm:$0xff]
        %v1927 = vld [vmem:[#allocation8 + $0x18] sm:$0xff]
        %v1928 = vld [vmem:[#allocation8 + $0x20] sm:$0xff]
        %v1929 = vld [vmem:[#allocation8 + $0x28] sm:$0xff]
        %v1930 = vld [vmem:[#allocation8 + $0x30] sm:$0xff]
        %v1931 = vld [vmem:[#allocation8 + $0x38] sm:$0xff]
        %v1932 = vld [vmem:[#allocation8 + $0x40] sm:$0xff]
        %v1933 = vld [vmem:[#allocation8 + $0x48] sm:$0xff]
        %v1934 = vld [vmem:[#allocation8 + $0x50] sm:$0xff]
        %v1935 = vld [vmem:[#allocation8 + $0x58] sm:$0xff]
        %v1936 = vld [vmem:[#allocation8 + $0x60] sm:$0xff]
        %v1937 = vld [vmem:[#allocation8 + $0x68] sm:$0xff]
        %v1938 = vld [vmem:[#allocation8 + $0x70] sm:$0xff]
        %v1939 = vld [vmem:[#allocation8 + $0x78] sm:$0xff]
        %v1940 = vld [vmem:[#allocation8 + $0x80] sm:$0xff]
        %v1941 = vld [vmem:[#allocation8 + $0x88] sm:$0xff]
        %v1942 = vld [vmem:[#allocation8 + $0x90] sm:$0xff]
        %v1943 = vld [vmem:[#allocation8 + $0x98] sm:$0xff]
        %v1944 = vld [vmem:[#allocation8 + $0xa0] sm:$0xff]
        %v1945 = vld [vmem:[#allocation8 + $0xa8] sm:$0xff]
        %v1946 = vld [vmem:[#allocation8 + $0xb0] sm:$0xff]
        %v1947 = vld [vmem:[#allocation8 + $0xb8] sm:$0xff]
        %v1948 = vld [vmem:[#allocation8 + $0xc0] sm:$0xff]
        %v1949 = vld [vmem:[#allocation8 + $0xc8] sm:$0xff]
        %v1950 = vld [vmem:[#allocation8 + $0xd0] sm:$0xff]
        %v1951 = vld [vmem:[#allocation8 + $0xd8] sm:$0xff]
        %v1952 = vld [vmem:[#allocation8 + $0xe0] sm:$0xff]
        %v1953 = vld [vmem:[#allocation8 + $0xe8] sm:$0xff]
        %v1954 = vld [vmem:[#allocation8 + $0xf0] sm:$0xff]
        %v1955 = vld [vmem:[#allocation8 + $0xf8] sm:$0xff]
        %v1988 = vunpack.c.l.b16 %v1924
        %v1989 = vunpack.c.h.b16 %v1924
        %v1990 = vunpack.c.l.b16 %v1925
        %v1991 = vunpack.c.h.b16 %v1925
        %v1992 = vunpack.c.l.b16 %v1926
        %v1993 = vunpack.c.h.b16 %v1926
        %v1994 = vunpack.c.l.b16 %v1927
        %v1995 = vunpack.c.h.b16 %v1927
        %v1996 = vunpack.c.l.b16 %v1928
        %v1997 = vunpack.c.h.b16 %v1928
        %v1998 = vunpack.c.l.b16 %v1929
        %v1999 = vunpack.c.h.b16 %v1929
        %v2000 = vunpack.c.l.b16 %v1930
        %v2001 = vunpack.c.h.b16 %v1930
        %v2002 = vunpack.c.l.b16 %v1931
        %v2003 = vunpack.c.h.b16 %v1931
        %v2004 = vunpack.c.l.b16 %v1932
        %v2005 = vunpack.c.h.b16 %v1932
        %v2006 = vunpack.c.l.b16 %v1933
        %v2007 = vunpack.c.h.b16 %v1933
        %v2008 = vunpack.c.l.b16 %v1934
        %v2009 = vunpack.c.h.b16 %v1934
        %v2010 = vunpack.c.l.b16 %v1935
        %v2011 = vunpack.c.h.b16 %v1935
        %v2012 = vunpack.c.l.b16 %v1936
        %v2013 = vunpack.c.h.b16 %v1936
        %v2014 = vunpack.c.l.b16 %v1937
        %v2015 = vunpack.c.h.b16 %v1937
        %v2016 = vunpack.c.l.b16 %v1938
        %v2017 = vunpack.c.h.b16 %v1938
        %v2018 = vunpack.c.l.b16 %v1939
        %v2019 = vunpack.c.h.b16 %v1939
        %v2020 = vunpack.c.l.b16 %v1940
        %v2021 = vunpack.c.h.b16 %v1940
        %v2022 = vunpack.c.l.b16 %v1941
        %v2023 = vunpack.c.h.b16 %v1941
        %v2024 = vunpack.c.l.b16 %v1942
        %v2025 = vunpack.c.h.b16 %v1942
        %v2026 = vunpack.c.l.b16 %v1943
        %v2027 = vunpack.c.h.b16 %v1943
        %v2028 = vunpack.c.l.b16 %v1944
        %v2029 = vunpack.c.h.b16 %v1944
        %v2030 = vunpack.c.l.b16 %v1945
        %v2031 = vunpack.c.h.b16 %v1945
        %v2032 = vunpack.c.l.b16 %v1946
        %v2033 = vunpack.c.h.b16 %v1946
        %v2034 = vunpack.c.l.b16 %v1947
        %v2035 = vunpack.c.h.b16 %v1947
        %v2036 = vunpack.c.l.b16 %v1948
        %v2037 = vunpack.c.h.b16 %v1948
        %v2038 = vunpack.c.l.b16 %v1949
        %v2039 = vunpack.c.h.b16 %v1949
        %v2040 = vunpack.c.l.b16 %v1950
        %v2041 = vunpack.c.h.b16 %v1950
        %v2042 = vunpack.c.l.b16 %v1951
        %v2043 = vunpack.c.h.b16 %v1951
        %v2044 = vunpack.c.l.b16 %v1952
        %v2045 = vunpack.c.h.b16 %v1952
        %v2046 = vunpack.c.l.b16 %v1953
        %v2047 = vunpack.c.h.b16 %v1953
        %v2048 = vunpack.c.l.b16 %v1954
        %v2049 = vunpack.c.h.b16 %v1954
        %v2050 = vunpack.c.l.b16 %v1955
        %v2051 = vunpack.c.h.b16 %v1955
        %v2052 = vpack.c.b16 %v1992, %v1988
        %v2053 = vpack.c.b16 %v1993, %v1989
        %v2054 = vpack.c.b16 %v1994, %v1990
        %v2055 = vpack.c.b16 %v1995, %v1991
        %v2056 = vpack.c.b16 %v2000, %v1996
        %v2057 = vpack.c.b16 %v2001, %v1997
        %v2058 = vpack.c.b16 %v2002, %v1998
        %v2059 = vpack.c.b16 %v2003, %v1999
        %v2060 = vpack.c.b16 %v2008, %v2004
        %v2061 = vpack.c.b16 %v2009, %v2005
        %v2062 = vpack.c.b16 %v2010, %v2006
        %v2063 = vpack.c.b16 %v2011, %v2007
        %v2064 = vpack.c.b16 %v2016, %v2012
        %v2065 = vpack.c.b16 %v2017, %v2013
        %v2066 = vpack.c.b16 %v2018, %v2014
        %v2067 = vpack.c.b16 %v2019, %v2015
        %v2068 = vpack.c.b16 %v2024, %v2020
        %v2069 = vpack.c.b16 %v2025, %v2021
        %v2070 = vpack.c.b16 %v2026, %v2022
        %v2071 = vpack.c.b16 %v2027, %v2023
        %v2072 = vpack.c.b16 %v2032, %v2028
        %v2073 = vpack.c.b16 %v2033, %v2029
        %v2074 = vpack.c.b16 %v2034, %v2030
        %v2075 = vpack.c.b16 %v2035, %v2031
        %v2076 = vpack.c.b16 %v2040, %v2036
        %v2077 = vpack.c.b16 %v2041, %v2037
        %v2078 = vpack.c.b16 %v2042, %v2038
        %v2079 = vpack.c.b16 %v2043, %v2039
        %v2080 = vpack.c.b16 %v2048, %v2044
        %v2081 = vpack.c.b16 %v2049, %v2045
        %v2082 = vpack.c.b16 %v2050, %v2046
        %v2083 = vpack.c.b16 %v2051, %v2047
        %2116 = vmatprep.subr.bf16.mxu0 %v2081
        %2117 = vmatpush1.bf16.msra.mxu0 %v2080
        %2118 = vmatprep.subr.bf16.mxu0 %v2077
        %2119 = vmatpush1.bf16.msra.mxu0 %v2076
        %2120 = vmatprep.subr.bf16.mxu0 %v2073
        %2121 = vmatpush1.bf16.msra.mxu0 %v2072
        %2122 = vmatprep.subr.bf16.mxu0 %v2069
        %2123 = vmatpush1.bf16.msra.mxu0 %v2068
        %2124 = vmatprep.subr.bf16.mxu0 %v2065
        %2125 = vmatpush1.bf16.msra.mxu0 %v2064
        %2126 = vmatprep.subr.bf16.mxu0 %v2061
        %2127 = vmatpush1.bf16.msra.mxu0 %v2060
        %2128 = vmatprep.subr.bf16.mxu0 %v2057
        %2129 = vmatpush1.bf16.msra.mxu0 %v2056
        %2130 = vmatprep.subr.bf16.mxu0 %v2053
        %2131 = vmatpush1.bf16.msra.mxu0 %v2052
        %2132 = vmatprep.subr.bf16.mxu0 0
        %2133 = vmatpush2.bf16.msra.mxu0 0
        %2134 = vmatprep.subr.bf16.mxu0 0
        %2135 = vmatpush2.bf16.msra.mxu0 0
        %2136 = vmatprep.subr.bf16.mxu0 0
        %2137 = vmatpush2.bf16.msra.mxu0 0
        %2138 = vmatprep.subr.bf16.mxu0 0
        %2139 = vmatpush2.bf16.msra.mxu0 0
        %2140 = vmatprep.subr.bf16.mxu0 0
        %2141 = vmatpush2.bf16.msra.mxu0 0
        %2142 = vmatprep.subr.bf16.mxu0 0
        %2143 = vmatpush2.bf16.msra.mxu0 0
        %2144 = vmatprep.subr.bf16.mxu0 0
        %2145 = vmatpush2.bf16.msra.mxu0 0
        %2146 = vmatprep.subr.bf16.mxu0 0
        %2147 = vmatpush2.bf16.msra.mxu0 0
        %2148 = vmatprep.mubr.bf16.mxu0 0
        %2149 = vmatmul.mubr.bf16.gmra.mxu0 %v1923
        %v2150 = vpop.f32.mrf.mxu0
        %v2151 = vadd.f32 0.0, %v2150
        %v2152 = vpop.f32.mrf.mxu0
        %v2153 = vadd.f32 0.0, %v2152
        %v2154 = vpop.f32.mrf.mxu0
        %v2155 = vpop.f32.mrf.mxu0
        %2156 = vdwg.mxu0
        %2157 = vmatprep.subr.bf16.mxu0 %v2083
        %2158 = vmatpush1.bf16.msra.mxu0 %v2082
        %2159 = vmatprep.subr.bf16.mxu0 %v2079
        %2160 = vmatpush1.bf16.msra.mxu0 %v2078
        %2161 = vmatprep.subr.bf16.mxu0 %v2075
        %2162 = vmatpush1.bf16.msra.mxu0 %v2074
        %2163 = vmatprep.subr.bf16.mxu0 %v2071
        %2164 = vmatpush1.bf16.msra.mxu0 %v2070
        %2165 = vmatprep.subr.bf16.mxu0 %v2067
        %2166 = vmatpush1.bf16.msra.mxu0 %v2066
        %2167 = vmatprep.subr.bf16.mxu0 %v2063
        %2168 = vmatpush1.bf16.msra.mxu0 %v2062
        %2169 = vmatprep.subr.bf16.mxu0 %v2059
        %2170 = vmatpush1.bf16.msra.mxu0 %v2058
        %2171 = vmatprep.subr.bf16.mxu0 %v2055
        %2172 = vmatpush1.bf16.msra.mxu0 %v2054
        %2173 = vmatprep.subr.bf16.mxu0 0
        %2174 = vmatpush2.bf16.msra.mxu0 0
        %2175 = vmatprep.subr.bf16.mxu0 0
        %2176 = vmatpush2.bf16.msra.mxu0 0
        %2177 = vmatprep.subr.bf16.mxu0 0
        %2178 = vmatpush2.bf16.msra.mxu0 0
        %2179 = vmatprep.subr.bf16.mxu0 0
        %2180 = vmatpush2.bf16.msra.mxu0 0
        %2181 = vmatprep.subr.bf16.mxu0 0
        %2182 = vmatpush2.bf16.msra.mxu0 0
        %2183 = vmatprep.subr.bf16.mxu0 0
        %2184 = vmatpush2.bf16.msra.mxu0 0
        %2185 = vmatprep.subr.bf16.mxu0 0
        %2186 = vmatpush2.bf16.msra.mxu0 0
        %2187 = vmatprep.subr.bf16.mxu0 0
        %2188 = vmatpush2.bf16.msra.mxu0 0
        %2189 = vmatprep.mubr.bf16.mxu0 0
        %2190 = vmatmul.mubr.bf16.gmra.mxu0 %v1923
        %v2191 = vpop.f32.mrf.mxu0
        %v2192 = vadd.f32 0.0, %v2191
        %v2193 = vpop.f32.mrf.mxu0
        %v2194 = vadd.f32 0.0, %v2193
        %v2195 = vpop.f32.mrf.mxu0
        %v2196 = vpop.f32.mrf.mxu0
        %2197 = vdwg.mxu0
        %v2198 = vadd.f32 %v1919, %v2151
        %v2199 = vadd.f32 %v1920, %v2153
        %v2200 = vadd.f32 %v1921, %v2192
        %v2201 = vadd.f32 %v1922, %v2194
        %v2202 = vxor.u32 %v2198, 2147483648
        %v2203 = vmul.f32 %v2202, 1.442695
        %v2204 = vpow.pop %v2203
        %v2205 = vadd.f32 %v2204, 1.0
        %v2206 = vrcp.pop %v2205
        %v2207 = vmul.f32 1.0, %v2206
        %v2208 = vxor.u32 %v2199, 2147483648
        %v2209 = vmul.f32 %v2208, 1.442695
        %v2210 = vpow.pop %v2209
        %v2211 = vadd.f32 %v2210, 1.0
        %v2212 = vrcp.pop %v2211
        %v2213 = vmul.f32 1.0, %v2212
        %v2214 = vtanh.pop %v2200
        %v2215 = vxor.u32 %v2201, 2147483648
        %v2216 = vmul.f32 %v2215, 1.442695
        %v2217 = vpow.pop %v2216
        %v2218 = vadd.f32 %v2217, 1.0
        %v2219 = vrcp.pop %v2218
        %v2220 = vmul.f32 1.0, %v2219
        %v2221 = vmul.f32 %v2213, %v1913
        %v2222 = vmul.f32 %v2207, %v2214
        %v2223 = vadd.f32 %v2221, %v2222
        %v2224 = vtanh.pop %v2223
        %v2225 = vmul.f32 %v2220, %v2224
        %s2226 = scalar_lea.vmem %s243, 40 [#allocation9]
        %2227 = vst [vmem:[%s2226] sm:$0xff] %v2225
        %s2228 = scalar_lea.vmem [#allocation2], 192
        %v2229 = vld [vmem:[%s2228] sm:$0xff]
        %v2230 = vld [vmem:[%s2228 + $0x8] sm:$0xff]
        %v2231 = vld [vmem:[%s2228 + $0x10] sm:$0xff]
        %v2232 = vld [vmem:[%s2228 + $0x18] sm:$0xff]
        %v2233 = vpack.c.bf16 %v2225, %v2225
        %v2234 = vld [vmem:[#allocation8] sm:$0xff]
        %v2235 = vld [vmem:[#allocation8 + $0x8] sm:$0xff]
        %v2236 = vld [vmem:[#allocation8 + $0x10] sm:$0xff]
        %v2237 = vld [vmem:[#allocation8 + $0x18] sm:$0xff]
        %v2238 = vld [vmem:[#allocation8 + $0x20] sm:$0xff]
        %v2239 = vld [vmem:[#allocation8 + $0x28] sm:$0xff]
        %v2240 = vld [vmem:[#allocation8 + $0x30] sm:$0xff]
        %v2241 = vld [vmem:[#allocation8 + $0x38] sm:$0xff]
        %v2242 = vld [vmem:[#allocation8 + $0x40] sm:$0xff]
        %v2243 = vld [vmem:[#allocation8 + $0x48] sm:$0xff]
        %v2244 = vld [vmem:[#allocation8 + $0x50] sm:$0xff]
        %v2245 = vld [vmem:[#allocation8 + $0x58] sm:$0xff]
        %v2246 = vld [vmem:[#allocation8 + $0x60] sm:$0xff]
        %v2247 = vld [vmem:[#allocation8 + $0x68] sm:$0xff]
        %v2248 = vld [vmem:[#allocation8 + $0x70] sm:$0xff]
        %v2249 = vld [vmem:[#allocation8 + $0x78] sm:$0xff]
        %v2250 = vld [vmem:[#allocation8 + $0x80] sm:$0xff]
        %v2251 = vld [vmem:[#allocation8 + $0x88] sm:$0xff]
        %v2252 = vld [vmem:[#allocation8 + $0x90] sm:$0xff]
        %v2253 = vld [vmem:[#allocation8 + $0x98] sm:$0xff]
        %v2254 = vld [vmem:[#allocation8 + $0xa0] sm:$0xff]
        %v2255 = vld [vmem:[#allocation8 + $0xa8] sm:$0xff]
        %v2256 = vld [vmem:[#allocation8 + $0xb0] sm:$0xff]
        %v2257 = vld [vmem:[#allocation8 + $0xb8] sm:$0xff]
        %v2258 = vld [vmem:[#allocation8 + $0xc0] sm:$0xff]
        %v2259 = vld [vmem:[#allocation8 + $0xc8] sm:$0xff]
        %v2260 = vld [vmem:[#allocation8 + $0xd0] sm:$0xff]
        %v2261 = vld [vmem:[#allocation8 + $0xd8] sm:$0xff]
        %v2262 = vld [vmem:[#allocation8 + $0xe0] sm:$0xff]
        %v2263 = vld [vmem:[#allocation8 + $0xe8] sm:$0xff]
        %v2264 = vld [vmem:[#allocation8 + $0xf0] sm:$0xff]
        %v2265 = vld [vmem:[#allocation8 + $0xf8] sm:$0xff]
        %v2298 = vunpack.c.l.b16 %v2234
        %v2299 = vunpack.c.h.b16 %v2234
        %v2300 = vunpack.c.l.b16 %v2235
        %v2301 = vunpack.c.h.b16 %v2235
        %v2302 = vunpack.c.l.b16 %v2236
        %v2303 = vunpack.c.h.b16 %v2236
        %v2304 = vunpack.c.l.b16 %v2237
        %v2305 = vunpack.c.h.b16 %v2237
        %v2306 = vunpack.c.l.b16 %v2238
        %v2307 = vunpack.c.h.b16 %v2238
        %v2308 = vunpack.c.l.b16 %v2239
        %v2309 = vunpack.c.h.b16 %v2239
        %v2310 = vunpack.c.l.b16 %v2240
        %v2311 = vunpack.c.h.b16 %v2240
        %v2312 = vunpack.c.l.b16 %v2241
        %v2313 = vunpack.c.h.b16 %v2241
        %v2314 = vunpack.c.l.b16 %v2242
        %v2315 = vunpack.c.h.b16 %v2242
        %v2316 = vunpack.c.l.b16 %v2243
        %v2317 = vunpack.c.h.b16 %v2243
        %v2318 = vunpack.c.l.b16 %v2244
        %v2319 = vunpack.c.h.b16 %v2244
        %v2320 = vunpack.c.l.b16 %v2245
        %v2321 = vunpack.c.h.b16 %v2245
        %v2322 = vunpack.c.l.b16 %v2246
        %v2323 = vunpack.c.h.b16 %v2246
        %v2324 = vunpack.c.l.b16 %v2247
        %v2325 = vunpack.c.h.b16 %v2247
        %v2326 = vunpack.c.l.b16 %v2248
        %v2327 = vunpack.c.h.b16 %v2248
        %v2328 = vunpack.c.l.b16 %v2249
        %v2329 = vunpack.c.h.b16 %v2249
        %v2330 = vunpack.c.l.b16 %v2250
        %v2331 = vunpack.c.h.b16 %v2250
        %v2332 = vunpack.c.l.b16 %v2251
        %v2333 = vunpack.c.h.b16 %v2251
        %v2334 = vunpack.c.l.b16 %v2252
        %v2335 = vunpack.c.h.b16 %v2252
        %v2336 = vunpack.c.l.b16 %v2253
        %v2337 = vunpack.c.h.b16 %v2253
        %v2338 = vunpack.c.l.b16 %v2254
        %v2339 = vunpack.c.h.b16 %v2254
        %v2340 = vunpack.c.l.b16 %v2255
        %v2341 = vunpack.c.h.b16 %v2255
        %v2342 = vunpack.c.l.b16 %v2256
        %v2343 = vunpack.c.h.b16 %v2256
        %v2344 = vunpack.c.l.b16 %v2257
        %v2345 = vunpack.c.h.b16 %v2257
        %v2346 = vunpack.c.l.b16 %v2258
        %v2347 = vunpack.c.h.b16 %v2258
        %v2348 = vunpack.c.l.b16 %v2259
        %v2349 = vunpack.c.h.b16 %v2259
        %v2350 = vunpack.c.l.b16 %v2260
        %v2351 = vunpack.c.h.b16 %v2260
        %v2352 = vunpack.c.l.b16 %v2261
        %v2353 = vunpack.c.h.b16 %v2261
        %v2354 = vunpack.c.l.b16 %v2262
        %v2355 = vunpack.c.h.b16 %v2262
        %v2356 = vunpack.c.l.b16 %v2263
        %v2357 = vunpack.c.h.b16 %v2263
        %v2358 = vunpack.c.l.b16 %v2264
        %v2359 = vunpack.c.h.b16 %v2264
        %v2360 = vunpack.c.l.b16 %v2265
        %v2361 = vunpack.c.h.b16 %v2265
        %v2362 = vpack.c.b16 %v2302, %v2298
        %v2363 = vpack.c.b16 %v2303, %v2299
        %v2364 = vpack.c.b16 %v2304, %v2300
        %v2365 = vpack.c.b16 %v2305, %v2301
        %v2366 = vpack.c.b16 %v2310, %v2306
        %v2367 = vpack.c.b16 %v2311, %v2307
        %v2368 = vpack.c.b16 %v2312, %v2308
        %v2369 = vpack.c.b16 %v2313, %v2309
        %v2370 = vpack.c.b16 %v2318, %v2314
        %v2371 = vpack.c.b16 %v2319, %v2315
        %v2372 = vpack.c.b16 %v2320, %v2316
        %v2373 = vpack.c.b16 %v2321, %v2317
        %v2374 = vpack.c.b16 %v2326, %v2322
        %v2375 = vpack.c.b16 %v2327, %v2323
        %v2376 = vpack.c.b16 %v2328, %v2324
        %v2377 = vpack.c.b16 %v2329, %v2325
        %v2378 = vpack.c.b16 %v2334, %v2330
        %v2379 = vpack.c.b16 %v2335, %v2331
        %v2380 = vpack.c.b16 %v2336, %v2332
        %v2381 = vpack.c.b16 %v2337, %v2333
        %v2382 = vpack.c.b16 %v2342, %v2338
        %v2383 = vpack.c.b16 %v2343, %v2339
        %v2384 = vpack.c.b16 %v2344, %v2340
        %v2385 = vpack.c.b16 %v2345, %v2341
        %v2386 = vpack.c.b16 %v2350, %v2346
        %v2387 = vpack.c.b16 %v2351, %v2347
        %v2388 = vpack.c.b16 %v2352, %v2348
        %v2389 = vpack.c.b16 %v2353, %v2349
        %v2390 = vpack.c.b16 %v2358, %v2354
        %v2391 = vpack.c.b16 %v2359, %v2355
        %v2392 = vpack.c.b16 %v2360, %v2356
        %v2393 = vpack.c.b16 %v2361, %v2357
        %2426 = vmatprep.subr.bf16.mxu0 %v2391
        %2427 = vmatpush1.bf16.msra.mxu0 %v2390
        %2428 = vmatprep.subr.bf16.mxu0 %v2387
        %2429 = vmatpush1.bf16.msra.mxu0 %v2386
        %2430 = vmatprep.subr.bf16.mxu0 %v2383
        %2431 = vmatpush1.bf16.msra.mxu0 %v2382
        %2432 = vmatprep.subr.bf16.mxu0 %v2379
        %2433 = vmatpush1.bf16.msra.mxu0 %v2378
        %2434 = vmatprep.subr.bf16.mxu0 %v2375
        %2435 = vmatpush1.bf16.msra.mxu0 %v2374
        %2436 = vmatprep.subr.bf16.mxu0 %v2371
        %2437 = vmatpush1.bf16.msra.mxu0 %v2370
        %2438 = vmatprep.subr.bf16.mxu0 %v2367
        %2439 = vmatpush1.bf16.msra.mxu0 %v2366
        %2440 = vmatprep.subr.bf16.mxu0 %v2363
        %2441 = vmatpush1.bf16.msra.mxu0 %v2362
        %2442 = vmatprep.subr.bf16.mxu0 0
        %2443 = vmatpush2.bf16.msra.mxu0 0
        %2444 = vmatprep.subr.bf16.mxu0 0
        %2445 = vmatpush2.bf16.msra.mxu0 0
        %2446 = vmatprep.subr.bf16.mxu0 0
        %2447 = vmatpush2.bf16.msra.mxu0 0
        %2448 = vmatprep.subr.bf16.mxu0 0
        %2449 = vmatpush2.bf16.msra.mxu0 0
        %2450 = vmatprep.subr.bf16.mxu0 0
        %2451 = vmatpush2.bf16.msra.mxu0 0
        %2452 = vmatprep.subr.bf16.mxu0 0
        %2453 = vmatpush2.bf16.msra.mxu0 0
        %2454 = vmatprep.subr.bf16.mxu0 0
        %2455 = vmatpush2.bf16.msra.mxu0 0
        %2456 = vmatprep.subr.bf16.mxu0 0
        %2457 = vmatpush2.bf16.msra.mxu0 0
        %2458 = vmatprep.mubr.bf16.mxu0 0
        %2459 = vmatmul.mubr.bf16.gmra.mxu0 %v2233
        %v2460 = vpop.f32.mrf.mxu0
        %v2461 = vadd.f32 0.0, %v2460
        %v2462 = vpop.f32.mrf.mxu0
        %v2463 = vadd.f32 0.0, %v2462
        %v2464 = vpop.f32.mrf.mxu0
        %v2465 = vpop.f32.mrf.mxu0
        %2466 = vdwg.mxu0
        %2467 = vmatprep.subr.bf16.mxu0 %v2393
        %2468 = vmatpush1.bf16.msra.mxu0 %v2392
        %2469 = vmatprep.subr.bf16.mxu0 %v2389
        %2470 = vmatpush1.bf16.msra.mxu0 %v2388
        %2471 = vmatprep.subr.bf16.mxu0 %v2385
        %2472 = vmatpush1.bf16.msra.mxu0 %v2384
        %2473 = vmatprep.subr.bf16.mxu0 %v2381
        %2474 = vmatpush1.bf16.msra.mxu0 %v2380
        %2475 = vmatprep.subr.bf16.mxu0 %v2377
        %2476 = vmatpush1.bf16.msra.mxu0 %v2376
        %2477 = vmatprep.subr.bf16.mxu0 %v2373
        %2478 = vmatpush1.bf16.msra.mxu0 %v2372
        %2479 = vmatprep.subr.bf16.mxu0 %v2369
        %2480 = vmatpush1.bf16.msra.mxu0 %v2368
        %2481 = vmatprep.subr.bf16.mxu0 %v2365
        %2482 = vmatpush1.bf16.msra.mxu0 %v2364
        %2483 = vmatprep.subr.bf16.mxu0 0
        %2484 = vmatpush2.bf16.msra.mxu0 0
        %2485 = vmatprep.subr.bf16.mxu0 0
        %2486 = vmatpush2.bf16.msra.mxu0 0
        %2487 = vmatprep.subr.bf16.mxu0 0
        %2488 = vmatpush2.bf16.msra.mxu0 0
        %2489 = vmatprep.subr.bf16.mxu0 0
        %2490 = vmatpush2.bf16.msra.mxu0 0
        %2491 = vmatprep.subr.bf16.mxu0 0
        %2492 = vmatpush2.bf16.msra.mxu0 0
        %2493 = vmatprep.subr.bf16.mxu0 0
        %2494 = vmatpush2.bf16.msra.mxu0 0
        %2495 = vmatprep.subr.bf16.mxu0 0
        %2496 = vmatpush2.bf16.msra.mxu0 0
        %2497 = vmatprep.subr.bf16.mxu0 0
        %2498 = vmatpush2.bf16.msra.mxu0 0
        %2499 = vmatprep.mubr.bf16.mxu0 0
        %2500 = vmatmul.mubr.bf16.gmra.mxu0 %v2233
        %v2501 = vpop.f32.mrf.mxu0
        %v2502 = vadd.f32 0.0, %v2501
        %v2503 = vpop.f32.mrf.mxu0
        %v2504 = vadd.f32 0.0, %v2503
        %v2505 = vpop.f32.mrf.mxu0
        %v2506 = vpop.f32.mrf.mxu0
        %2507 = vdwg.mxu0
        %v2508 = vadd.f32 %v2229, %v2461
        %v2509 = vadd.f32 %v2230, %v2463
        %v2510 = vadd.f32 %v2231, %v2502
        %v2511 = vadd.f32 %v2232, %v2504
        %v2512 = vxor.u32 %v2508, 2147483648
        %v2513 = vmul.f32 %v2512, 1.442695
        %v2514 = vpow.pop %v2513
        %v2515 = vadd.f32 %v2514, 1.0
        %v2516 = vrcp.pop %v2515
        %v2517 = vmul.f32 1.0, %v2516
        %v2518 = vxor.u32 %v2509, 2147483648
        %v2519 = vmul.f32 %v2518, 1.442695
        %v2520 = vpow.pop %v2519
        %v2521 = vadd.f32 %v2520, 1.0
        %v2522 = vrcp.pop %v2521
        %v2523 = vmul.f32 1.0, %v2522
        %v2524 = vtanh.pop %v2510
        %v2525 = vxor.u32 %v2511, 2147483648
        %v2526 = vmul.f32 %v2525, 1.442695
        %v2527 = vpow.pop %v2526
        %v2528 = vadd.f32 %v2527, 1.0
        %v2529 = vrcp.pop %v2528
        %v2530 = vmul.f32 1.0, %v2529
        %v2531 = vmul.f32 %v2523, %v2223
        %v2532 = vmul.f32 %v2517, %v2524
        %v2533 = vadd.f32 %v2531, %v2532
        %v2534 = vtanh.pop %v2533
        %v2535 = vmul.f32 %v2530, %v2534
        %s2536 = scalar_lea.vmem %s243, 48 [#allocation9]
        %2537 = vst [vmem:[%s2536] sm:$0xff] %v2535
        %s2538 = scalar_lea.vmem [#allocation2], 224
        %v2539 = vld [vmem:[%s2538] sm:$0xff]
        %v2540 = vld [vmem:[%s2538 + $0x8] sm:$0xff]
        %v2541 = vld [vmem:[%s2538 + $0x10] sm:$0xff]
        %v2542 = vld [vmem:[%s2538 + $0x18] sm:$0xff]
        %v2543 = vpack.c.bf16 %v2535, %v2535
        %v2544 = vld [vmem:[#allocation8] sm:$0xff]
        %v2545 = vld [vmem:[#allocation8 + $0x8] sm:$0xff]
        %v2546 = vld [vmem:[#allocation8 + $0x10] sm:$0xff]
        %v2547 = vld [vmem:[#allocation8 + $0x18] sm:$0xff]
        %v2548 = vld [vmem:[#allocation8 + $0x20] sm:$0xff]
        %v2549 = vld [vmem:[#allocation8 + $0x28] sm:$0xff]
        %v2550 = vld [vmem:[#allocation8 + $0x30] sm:$0xff]
        %v2551 = vld [vmem:[#allocation8 + $0x38] sm:$0xff]
        %v2552 = vld [vmem:[#allocation8 + $0x40] sm:$0xff]
        %v2553 = vld [vmem:[#allocation8 + $0x48] sm:$0xff]
        %v2554 = vld [vmem:[#allocation8 + $0x50] sm:$0xff]
        %v2555 = vld [vmem:[#allocation8 + $0x58] sm:$0xff]
        %v2556 = vld [vmem:[#allocation8 + $0x60] sm:$0xff]
        %v2557 = vld [vmem:[#allocation8 + $0x68] sm:$0xff]
        %v2558 = vld [vmem:[#allocation8 + $0x70] sm:$0xff]
        %v2559 = vld [vmem:[#allocation8 + $0x78] sm:$0xff]
        %v2560 = vld [vmem:[#allocation8 + $0x80] sm:$0xff]
        %v2561 = vld [vmem:[#allocation8 + $0x88] sm:$0xff]
        %v2562 = vld [vmem:[#allocation8 + $0x90] sm:$0xff]
        %v2563 = vld [vmem:[#allocation8 + $0x98] sm:$0xff]
        %v2564 = vld [vmem:[#allocation8 + $0xa0] sm:$0xff]
        %v2565 = vld [vmem:[#allocation8 + $0xa8] sm:$0xff]
        %v2566 = vld [vmem:[#allocation8 + $0xb0] sm:$0xff]
        %v2567 = vld [vmem:[#allocation8 + $0xb8] sm:$0xff]
        %v2568 = vld [vmem:[#allocation8 + $0xc0] sm:$0xff]
        %v2569 = vld [vmem:[#allocation8 + $0xc8] sm:$0xff]
        %v2570 = vld [vmem:[#allocation8 + $0xd0] sm:$0xff]
        %v2571 = vld [vmem:[#allocation8 + $0xd8] sm:$0xff]
        %v2572 = vld [vmem:[#allocation8 + $0xe0] sm:$0xff]
        %v2573 = vld [vmem:[#allocation8 + $0xe8] sm:$0xff]
        %v2574 = vld [vmem:[#allocation8 + $0xf0] sm:$0xff]
        %v2575 = vld [vmem:[#allocation8 + $0xf8] sm:$0xff]
        %v2608 = vunpack.c.l.b16 %v2544
        %v2609 = vunpack.c.h.b16 %v2544
        %v2610 = vunpack.c.l.b16 %v2545
        %v2611 = vunpack.c.h.b16 %v2545
        %v2612 = vunpack.c.l.b16 %v2546
        %v2613 = vunpack.c.h.b16 %v2546
        %v2614 = vunpack.c.l.b16 %v2547
        %v2615 = vunpack.c.h.b16 %v2547
        %v2616 = vunpack.c.l.b16 %v2548
        %v2617 = vunpack.c.h.b16 %v2548
        %v2618 = vunpack.c.l.b16 %v2549
        %v2619 = vunpack.c.h.b16 %v2549
        %v2620 = vunpack.c.l.b16 %v2550
        %v2621 = vunpack.c.h.b16 %v2550
        %v2622 = vunpack.c.l.b16 %v2551
        %v2623 = vunpack.c.h.b16 %v2551
        %v2624 = vunpack.c.l.b16 %v2552
        %v2625 = vunpack.c.h.b16 %v2552
        %v2626 = vunpack.c.l.b16 %v2553
        %v2627 = vunpack.c.h.b16 %v2553
        %v2628 = vunpack.c.l.b16 %v2554
        %v2629 = vunpack.c.h.b16 %v2554
        %v2630 = vunpack.c.l.b16 %v2555
        %v2631 = vunpack.c.h.b16 %v2555
        %v2632 = vunpack.c.l.b16 %v2556
        %v2633 = vunpack.c.h.b16 %v2556
        %v2634 = vunpack.c.l.b16 %v2557
        %v2635 = vunpack.c.h.b16 %v2557
        %v2636 = vunpack.c.l.b16 %v2558
        %v2637 = vunpack.c.h.b16 %v2558
        %v2638 = vunpack.c.l.b16 %v2559
        %v2639 = vunpack.c.h.b16 %v2559
        %v2640 = vunpack.c.l.b16 %v2560
        %v2641 = vunpack.c.h.b16 %v2560
        %v2642 = vunpack.c.l.b16 %v2561
        %v2643 = vunpack.c.h.b16 %v2561
        %v2644 = vunpack.c.l.b16 %v2562
        %v2645 = vunpack.c.h.b16 %v2562
        %v2646 = vunpack.c.l.b16 %v2563
        %v2647 = vunpack.c.h.b16 %v2563
        %v2648 = vunpack.c.l.b16 %v2564
        %v2649 = vunpack.c.h.b16 %v2564
        %v2650 = vunpack.c.l.b16 %v2565
        %v2651 = vunpack.c.h.b16 %v2565
        %v2652 = vunpack.c.l.b16 %v2566
        %v2653 = vunpack.c.h.b16 %v2566
        %v2654 = vunpack.c.l.b16 %v2567
        %v2655 = vunpack.c.h.b16 %v2567
        %v2656 = vunpack.c.l.b16 %v2568
        %v2657 = vunpack.c.h.b16 %v2568
        %v2658 = vunpack.c.l.b16 %v2569
        %v2659 = vunpack.c.h.b16 %v2569
        %v2660 = vunpack.c.l.b16 %v2570
        %v2661 = vunpack.c.h.b16 %v2570
        %v2662 = vunpack.c.l.b16 %v2571
        %v2663 = vunpack.c.h.b16 %v2571
        %v2664 = vunpack.c.l.b16 %v2572
        %v2665 = vunpack.c.h.b16 %v2572
        %v2666 = vunpack.c.l.b16 %v2573
        %v2667 = vunpack.c.h.b16 %v2573
        %v2668 = vunpack.c.l.b16 %v2574
        %v2669 = vunpack.c.h.b16 %v2574
        %v2670 = vunpack.c.l.b16 %v2575
        %v2671 = vunpack.c.h.b16 %v2575
        %v2672 = vpack.c.b16 %v2612, %v2608
        %v2673 = vpack.c.b16 %v2613, %v2609
        %v2674 = vpack.c.b16 %v2614, %v2610
        %v2675 = vpack.c.b16 %v2615, %v2611
        %v2676 = vpack.c.b16 %v2620, %v2616
        %v2677 = vpack.c.b16 %v2621, %v2617
        %v2678 = vpack.c.b16 %v2622, %v2618
        %v2679 = vpack.c.b16 %v2623, %v2619
        %v2680 = vpack.c.b16 %v2628, %v2624
        %v2681 = vpack.c.b16 %v2629, %v2625
        %v2682 = vpack.c.b16 %v2630, %v2626
        %v2683 = vpack.c.b16 %v2631, %v2627
        %v2684 = vpack.c.b16 %v2636, %v2632
        %v2685 = vpack.c.b16 %v2637, %v2633
        %v2686 = vpack.c.b16 %v2638, %v2634
        %v2687 = vpack.c.b16 %v2639, %v2635
        %v2688 = vpack.c.b16 %v2644, %v2640
        %v2689 = vpack.c.b16 %v2645, %v2641
        %v2690 = vpack.c.b16 %v2646, %v2642
        %v2691 = vpack.c.b16 %v2647, %v2643
        %v2692 = vpack.c.b16 %v2652, %v2648
        %v2693 = vpack.c.b16 %v2653, %v2649
        %v2694 = vpack.c.b16 %v2654, %v2650
        %v2695 = vpack.c.b16 %v2655, %v2651
        %v2696 = vpack.c.b16 %v2660, %v2656
        %v2697 = vpack.c.b16 %v2661, %v2657
        %v2698 = vpack.c.b16 %v2662, %v2658
        %v2699 = vpack.c.b16 %v2663, %v2659
        %v2700 = vpack.c.b16 %v2668, %v2664
        %v2701 = vpack.c.b16 %v2669, %v2665
        %v2702 = vpack.c.b16 %v2670, %v2666
        %v2703 = vpack.c.b16 %v2671, %v2667
        %2736 = vmatprep.subr.bf16.mxu0 %v2701
        %2737 = vmatpush1.bf16.msra.mxu0 %v2700
        %2738 = vmatprep.subr.bf16.mxu0 %v2697
        %2739 = vmatpush1.bf16.msra.mxu0 %v2696
        %2740 = vmatprep.subr.bf16.mxu0 %v2693
        %2741 = vmatpush1.bf16.msra.mxu0 %v2692
        %2742 = vmatprep.subr.bf16.mxu0 %v2689
        %2743 = vmatpush1.bf16.msra.mxu0 %v2688
        %2744 = vmatprep.subr.bf16.mxu0 %v2685
        %2745 = vmatpush1.bf16.msra.mxu0 %v2684
        %2746 = vmatprep.subr.bf16.mxu0 %v2681
        %2747 = vmatpush1.bf16.msra.mxu0 %v2680
        %2748 = vmatprep.subr.bf16.mxu0 %v2677
        %2749 = vmatpush1.bf16.msra.mxu0 %v2676
        %2750 = vmatprep.subr.bf16.mxu0 %v2673
        %2751 = vmatpush1.bf16.msra.mxu0 %v2672
        %2752 = vmatprep.subr.bf16.mxu0 0
        %2753 = vmatpush2.bf16.msra.mxu0 0
        %2754 = vmatprep.subr.bf16.mxu0 0
        %2755 = vmatpush2.bf16.msra.mxu0 0
        %2756 = vmatprep.subr.bf16.mxu0 0
        %2757 = vmatpush2.bf16.msra.mxu0 0
        %2758 = vmatprep.subr.bf16.mxu0 0
        %2759 = vmatpush2.bf16.msra.mxu0 0
        %2760 = vmatprep.subr.bf16.mxu0 0
        %2761 = vmatpush2.bf16.msra.mxu0 0
        %2762 = vmatprep.subr.bf16.mxu0 0
        %2763 = vmatpush2.bf16.msra.mxu0 0
        %2764 = vmatprep.subr.bf16.mxu0 0
        %2765 = vmatpush2.bf16.msra.mxu0 0
        %2766 = vmatprep.subr.bf16.mxu0 0
        %2767 = vmatpush2.bf16.msra.mxu0 0
        %2768 = vmatprep.mubr.bf16.mxu0 0
        %2769 = vmatmul.mubr.bf16.gmra.mxu0 %v2543
        %v2770 = vpop.f32.mrf.mxu0
        %v2771 = vadd.f32 0.0, %v2770
        %v2772 = vpop.f32.mrf.mxu0
        %v2773 = vadd.f32 0.0, %v2772
        %v2774 = vpop.f32.mrf.mxu0
        %v2775 = vpop.f32.mrf.mxu0
        %2776 = vdwg.mxu0
        %2777 = vmatprep.subr.bf16.mxu0 %v2703
        %2778 = vmatpush1.bf16.msra.mxu0 %v2702
        %2779 = vmatprep.subr.bf16.mxu0 %v2699
        %2780 = vmatpush1.bf16.msra.mxu0 %v2698
        %2781 = vmatprep.subr.bf16.mxu0 %v2695
        %2782 = vmatpush1.bf16.msra.mxu0 %v2694
        %2783 = vmatprep.subr.bf16.mxu0 %v2691
        %2784 = vmatpush1.bf16.msra.mxu0 %v2690
        %2785 = vmatprep.subr.bf16.mxu0 %v2687
        %2786 = vmatpush1.bf16.msra.mxu0 %v2686
        %2787 = vmatprep.subr.bf16.mxu0 %v2683
        %2788 = vmatpush1.bf16.msra.mxu0 %v2682
        %2789 = vmatprep.subr.bf16.mxu0 %v2679
        %2790 = vmatpush1.bf16.msra.mxu0 %v2678
        %2791 = vmatprep.subr.bf16.mxu0 %v2675
        %2792 = vmatpush1.bf16.msra.mxu0 %v2674
        %2793 = vmatprep.subr.bf16.mxu0 0
        %2794 = vmatpush2.bf16.msra.mxu0 0
        %2795 = vmatprep.subr.bf16.mxu0 0
        %2796 = vmatpush2.bf16.msra.mxu0 0
        %2797 = vmatprep.subr.bf16.mxu0 0
        %2798 = vmatpush2.bf16.msra.mxu0 0
        %2799 = vmatprep.subr.bf16.mxu0 0
        %2800 = vmatpush2.bf16.msra.mxu0 0
        %2801 = vmatprep.subr.bf16.mxu0 0
        %2802 = vmatpush2.bf16.msra.mxu0 0
        %2803 = vmatprep.subr.bf16.mxu0 0
        %2804 = vmatpush2.bf16.msra.mxu0 0
        %2805 = vmatprep.subr.bf16.mxu0 0
        %2806 = vmatpush2.bf16.msra.mxu0 0
        %2807 = vmatprep.subr.bf16.mxu0 0
        %2808 = vmatpush2.bf16.msra.mxu0 0
        %2809 = vmatprep.mubr.bf16.mxu0 0
        %2810 = vmatmul.mubr.bf16.gmra.mxu0 %v2543
        %v2811 = vpop.f32.mrf.mxu0
        %v2812 = vadd.f32 0.0, %v2811
        %v2813 = vpop.f32.mrf.mxu0
        %v2814 = vadd.f32 0.0, %v2813
        %v2815 = vpop.f32.mrf.mxu0
        %v2816 = vpop.f32.mrf.mxu0
        %2817 = vdwg.mxu0
        %v2818 = vadd.f32 %v2539, %v2771
        %v2819 = vadd.f32 %v2540, %v2773
        %v2820 = vadd.f32 %v2541, %v2812
        %v2821 = vadd.f32 %v2542, %v2814
        %v2822 = vxor.u32 %v2818, 2147483648
        %v2823 = vmul.f32 %v2822, 1.442695
        %v2824 = vpow.pop %v2823
        %v2825 = vadd.f32 %v2824, 1.0
        %v2826 = vrcp.pop %v2825
        %v2827 = vmul.f32 1.0, %v2826
        %v2828 = vxor.u32 %v2819, 2147483648
        %v2829 = vmul.f32 %v2828, 1.442695
        %v2830 = vpow.pop %v2829
        %v2831 = vadd.f32 %v2830, 1.0
        %v2832 = vrcp.pop %v2831
        %v2833 = vmul.f32 1.0, %v2832
        %v2834 = vtanh.pop %v2820
        %v2835 = vxor.u32 %v2821, 2147483648
        %v2836 = vmul.f32 %v2835, 1.442695
        %v2837 = vpow.pop %v2836
        %v2838 = vadd.f32 %v2837, 1.0
        %v2839 = vrcp.pop %v2838
        %v2840 = vmul.f32 1.0, %v2839
        %v2841 = vmul.f32 %v2833, %v2533
        %v2842 = vmul.f32 %v2827, %v2834
        %v2843 = vadd.f32 %v2841, %v2842
        %v2844 = vtanh.pop %v2843
        %v2845 = vmul.f32 %v2840, %v2844
        %s2846 = scalar_lea.vmem %s243, 56 [#allocation9]
        %2847 = vst [vmem:[%s2846] sm:$0xff] %v2845
        %s2848 = sand.u32 %s119, 1
        %s2849 = scalar_lea.sflag [#allocation5], %s2848
        %s2850 = sand.u32 %s119, 1
        %s2851 = smul.addr %s2850, 64
        %s2852 = scalar_lea.vmem [#allocation9], %s2851
        // Predicated region
        $region49: #{_run_lstm.1} parent=35 // pred_check
          %p2853 = pneg %p129
        $region50: #{_run_lstm.1} parent=35 // pred_check_branch
          %2855 = sbr.rel (%p2853) target = $region52
        $region51: #{_run_lstm.1} parent=35 // pred_region
          %s2857 = ssub.s32 1024, 1024
          %2858 = vsyncadd %s2849, %s2857
          %s2859 = smul.addr %s22, 128
          %s2860 = scalar_lea.hbm %s4, %s2859
          %s2861 = sshll.u32 %s2852, 4
          %s2862 = int_to_ptr.vmem [resolvable:$true] %s2861
          %2867 = dma.vmem_to_hbm [thread:$0]  %s2862, 1024, %s2860, %s2849, 128, 256, 8
        $region52: #{_run_lstm.1} parent=35 // pred_fallthru
          _
      $region36: #{_run_lstm.1} parent=5 // pred_fallthru
        _
      %p2868 = scmp.le.s32.totalorder 2, %s17
      // Predicated region
      $region53: #{_run_lstm.1} parent=5 // pred_check
        %p2869 = pneg %p2868
      $region54: #{_run_lstm.1} parent=5 // pred_check_branch
        %2871 = sbr.rel (%p2869) target = $region56
      $region55: #{_run_lstm.1} parent=5 // pred_region
        %s2872 = ssub.s32 %s17, 2
        // Predicated region
        $region57: #{_run_lstm.1} parent=55 // pred_check
          %p2873 = pneg %p135
        $region58: #{_run_lstm.1} parent=55 // pred_check_branch
          %2875 = sbr.rel (%p2873) target = $region60
        $region59: #{_run_lstm.1} parent=55 // pred_region
          %s2876 = sand.u32 %s120, 1
          %s2877 = scalar_lea.sflag [#allocation5], %s2876
          %s2878 = sand.u32 %s120, 1
          %s2879 = smul.addr %s2878, 64
          %s2880 = scalar_lea.vmem [#allocation9], %s2879
          %2881 = dma.done %s2877, 1024
        $region60: #{_run_lstm.1} parent=55 // pred_fallthru
          _
      $region56: #{_run_lstm.1} parent=5 // pred_fallthru
        _
    $region6: #{_run_lstm.1} parent=1 // loop_footer
      %s21 = sadd.s32 1, %s17
    $region7: #{_run_lstm.1} parent=1 // loop_footer_branch
      %16 = sbr.rel target = $region3
    $region8: #{_run_lstm.1} parent=1 // loop_exit
      _
    %2882 = vsyncpa [#allocation4], 1
    %s2883 = scalar_lea.sflag [#allocation4], 1
    %2884 = vsyncpa %s2883, 1
    %2885 = vsyncpa [#allocation7], 1
    %2886 = vsyncpa [#allocation5], 1
    %s2887 = scalar_lea.sflag [#allocation5], 1
    %2888 = vsyncpa %s2887, 1

</llo_original>
